<compile_context>
chip_gen: v5e
topology: v5e:2x2
jax: 0.10.0
libtpu: 0.0.40
codegen_flags: <defaults>
</compile_context>

<pallas_src>
import functools

import jax
import jax.numpy as jnp
from jax.experimental import pallas as pl
from jax.experimental.pallas import tpu as pltpu

EPS = 1e-12


def _round_up(x, m):
    return (x + m - 1) // m * m


def _pad2(x, rows, cols):
    pr, pc = rows - x.shape[0], cols - x.shape[1]
    if pr == 0 and pc == 0:
        return x
    return jnp.pad(x, ((0, pr), (0, pc)))


def embeddings_kernel(
    img_ref, pos_ref, aux_ref, type_ref,          # per-token streams (blocked)
    mask_row_ref,                                 # mask_embedding.weight[1]   (1, ID)
    w_img_ref, b_img_ref, gi_ref, bi_ref,         # img_linear + img_layer_norm
    w_pos_ref, b_pos_ref, gp_ref, bp_ref,         # pos_linear + pos_layer_norm
    pe_ref, gpe_ref, bpe_ref,                     # person_embed + person_layer_norm
    gf_ref, bf_ref,                               # final LayerNorm
    out_ref,
    *, hidden,
):
    tn, h_pad = out_ref.shape
    inv_h = 1.0 / float(hidden)
    lane = jax.lax.broadcasted_iota(jnp.int32, (tn, h_pad), 1)
    lane_mask = (lane < hidden).astype(jnp.float32)   # zero padded lanes in LN stats

    def ln(x, g, b):
        # padded lanes of x are exactly 0, so sum over all lanes == sum over real lanes
        mu = jnp.sum(x, axis=-1, keepdims=True) * inv_h
        c = (x - mu) * lane_mask
        var = jnp.sum(c * c, axis=-1, keepdims=True) * inv_h
        return c * jax.lax.rsqrt(var + EPS) * g + b   # g, b zero-padded -> padded lanes stay 0

    aux = aux_ref[...]                                # (tn, 2) int32: [person_id, img_mask]
    pid = aux[:, 0:1]
    msk = aux[:, 1:2].astype(jnp.float32)

    # --- mask embedding add (padding_idx=0 row is zero, so mask * row1; mask in {0,1}) ---
    img = img_ref[...].astype(jnp.float32) + msk * mask_row_ref[...]

    # --- image branch: linear + layer norm (f32 accumulate) ---
    x_im = jnp.dot(img, w_img_ref[...], preferred_element_type=jnp.float32) + b_img_ref[...]
    t_im = ln(x_im, gi_ref[...], bi_ref[...])

    # --- position branch ---
    x_pos = jnp.dot(pos_ref[...], w_pos_ref[...],
                    preferred_element_type=jnp.float32) + b_pos_ref[...]
    t_pos = ln(x_pos, gp_ref[...], bp_ref[...])

    # --- person branch: one-hot @ table (kept f32 so the lookup is bit-exact) ---
    # TODO(synk): for large vocab switch to a scalar-prefetched row gather instead of one-hot.
    v_pad = pe_ref.shape[0]
    viota = jax.lax.broadcasted_iota(jnp.int32, (tn, v_pad), 1)
    onehot = (pid == viota).astype(jnp.float32)
    x_per = jnp.dot(onehot, pe_ref[...], preferred_element_type=jnp.float32)
    t_per = ln(x_per, gpe_ref[...], bpe_ref[...])

    # --- combine + final LayerNorm (dropout = identity in eval) ---
    emb = t_im + type_ref[...].astype(jnp.float32) + t_pos + t_per
    out_ref[...] = ln(emb, gf_ref[...], bf_ref[...])


def image_roberta_image_embeddings(
    img_feat, img_pos_feat, person_ids, type_embeddings, img_masks, params,
    *, tile_n=256,
):
    """img_feat [N, img_dim], img_pos_feat [N, 7], person_ids [N], type_embeddings [N, H],
    img_masks [N] (values in {0, 1}); params is a dict of jnp arrays."""
    n, img_dim = img_feat.shape
    pos_dim = img_pos_feat.shape[1]
    hidden = params["w_img"].shape[1]
    vocab = params["person_embed"].shape[0]

    # sublane alignment (and bf16 sublane packing) for the row tiles
    assert tile_n > 0 and tile_n % 16 == 0, "tile_n must be a positive multiple of 16"

    h_pad = _round_up(hidden, 128)     # lane-dense output stores + LN lanes
    id_pad = _round_up(img_dim, 128)   # lane-dense img_feat stream / matmul K
    p_pad = _round_up(pos_dim, 8)      # 7 -> 8
    v_pad = _round_up(vocab, 128)

    grid_n = pl.cdiv(n, tile_n)
    if grid_n > 1 and grid_n % 2:      # keep both TensorCores busy on 2-TC chips
        grid_n += 1
    n_pad = grid_n * tile_n

    # per-token streams: fat ones in bf16 (kernel is HBM-bandwidth bound), aux as one block
    img_p = _pad2(img_feat, n_pad, id_pad).astype(jnp.bfloat16)
    type_p = _pad2(type_embeddings, n_pad, h_pad).astype(jnp.bfloat16)
    pos_p = _pad2(img_pos_feat.astype(jnp.float32), n_pad, p_pad)
    aux = jnp.stack([person_ids.astype(jnp.int32), img_masks.astype(jnp.int32)], axis=-1)
    aux_p = _pad2(aux, n_pad, 2)

    f32 = lambda a: a.astype(jnp.float32)
    wp = [
        _pad2(f32(params["mask_row1"]), 1, id_pad),
        _pad2(f32(params["w_img"]), id_pad, h_pad),
        _pad2(f32(params["b_img"]), 1, h_pad),
        _pad2(f32(params["g_img_ln"]), 1, h_pad),
        _pad2(f32(params["b_img_ln"]), 1, h_pad),
        _pad2(f32(params["w_pos"]), p_pad, h_pad),
        _pad2(f32(params["b_pos"]), 1, h_pad),
        _pad2(f32(params["g_pos_ln"]), 1, h_pad),
        _pad2(f32(params["b_pos_ln"]), 1, h_pad),
        _pad2(f32(params["person_embed"]), v_pad, h_pad),
        _pad2(f32(params["g_person_ln"]), 1, h_pad),
        _pad2(f32(params["b_person_ln"]), 1, h_pad),
        _pad2(f32(params["g_final_ln"]), 1, h_pad),
        _pad2(f32(params["b_final_ln"]), 1, h_pad),
    ]

    tok = lambda f: pl.BlockSpec((tile_n, f), lambda i: (i, 0))
    # grid-invariant params: whole array resident once in VMEM, not double-buffered
    wspec = pl.BlockSpec(memory_space=pltpu.MemorySpace.VMEM)

    grid_spec = pltpu.PrefetchScalarGridSpec(
        num_scalar_prefetch=0,
        grid=(grid_n,),
        in_specs=[tok(id_pad), tok(p_pad), tok(2), tok(h_pad)] + [wspec] * len(wp),
        out_specs=tok(h_pad),
    )

    out = pl.pallas_call(
        functools.partial(embeddings_kernel, hidden=hidden),
        out_shape=jax.ShapeDtypeStruct((n_pad, h_pad), jnp.float32),
        grid_spec=grid_spec,
        compiler_params=pltpu.CompilerParams(
            dimension_semantics=("parallel",),
            # v5e default scoped VMEM is 16 MiB; raise it so resident weights plus
            # double-buffered token tiles fit.  On v7x (64 MiB physical) drop tile_n
            # to ~128-256 if the compiler reports VMEM overflow.
            vmem_limit_bytes=64 * 1024 * 1024,
        ),
    )(img_p, pos_p, aux_p, type_p, *wp)

    return out[:n, :hidden]


# ---------------------------------------------------------------------------
# pure-JAX reference (f32 math), for correctness checking
# ---------------------------------------------------------------------------
def _ln_ref(x, g, b):
    mu = jnp.mean(x, axis=-1, keepdims=True)
    var = jnp.mean(jnp.square(x - mu), axis=-1, keepdims=True)
    return (x - mu) * jax.lax.rsqrt(var + EPS) * g + b


def reference(img_feat, img_pos_feat, person_ids, type_embeddings, img_masks, p):
    img = img_feat.astype(jnp.float32) + img_masks.astype(jnp.float32)[:, None] * p["mask_row1"]
    t_im = _ln_ref(img @ p["w_img"] + p["b_img"], p["g_img_ln"], p["b_img_ln"])
    t_pos = _ln_ref(img_pos_feat @ p["w_pos"] + p["b_pos"], p["g_pos_ln"], p["b_pos_ln"])
    t_per = _ln_ref(p["person_embed"][person_ids], p["g_person_ln"], p["b_person_ln"])
    emb = t_im + type_embeddings.astype(jnp.float32) + t_pos + t_per
    return _ln_ref(emb, p["g_final_ln"], p["b_final_ln"])


if __name__ == "__main__":
    jax.config.update("jax_default_matmul_precision", "highest")  # accurate f32 reference dots

    B, S, IMG_DIM, HIDDEN, VOCAB, POS_DIM = 2, 64, 16, 32, 64, 7
    N = B * S
    TILE_N = 32   # grid of 4 row-tiles: pipelined, even length for 2-TC chips

    key = jax.random.PRNGKey(0)
    ks = jax.random.split(key, 16)

    params = {
        "w_img": jax.random.normal(ks[0], (IMG_DIM, HIDDEN), jnp.float32) * 0.05,
        "b_img": jax.random.normal(ks[1], (1, HIDDEN), jnp.float32) * 0.01,
        "g_img_ln": 1.0 + 0.1 * jax.random.normal(ks[2], (1, HIDDEN), jnp.float32),
        "b_img_ln": 0.1 * jax.random.normal(ks[3], (1, HIDDEN), jnp.float32),
        "w_pos": jax.random.normal(ks[4], (POS_DIM, HIDDEN), jnp.float32) * 0.05,
        "b_pos": jax.random.normal(ks[5], (1, HIDDEN), jnp.float32) * 0.01,
        "g_pos_ln": 1.0 + 0.1 * jax.random.normal(ks[6], (1, HIDDEN), jnp.float32),
        "b_pos_ln": 0.1 * jax.random.normal(ks[7], (1, HIDDEN), jnp.float32),
        "person_embed": jax.random.normal(ks[8], (VOCAB, HIDDEN), jnp.float32) * 0.05,
        "g_person_ln": 1.0 + 0.1 * jax.random.normal(ks[9], (1, HIDDEN), jnp.float32),
        "b_person_ln": 0.1 * jax.random.normal(ks[10], (1, HIDDEN), jnp.float32),
        "g_final_ln": 1.0 + 0.1 * jax.random.normal(ks[11], (1, HIDDEN), jnp.float32),
        "b_final_ln": 0.1 * jax.random.normal(ks[12], (1, HIDDEN), jnp.float32),
        # mask_embedding weight row 1 (row 0 is forcibly zeroed in forward)
        "mask_row1": jax.random.normal(ks[13], (1, IMG_DIM), jnp.float32) * 0.05,
    }

    dk = jax.random.split(ks[14], 5)
    img_feat = jax.random.normal(dk[0], (B, S, IMG_DIM), jnp.float32)
    img_pos_feat = jax.random.uniform(dk[1], (B, S, POS_DIM), jnp.float32)
    person_ids = jax.random.randint(dk[2], (B, S), 0, VOCAB, jnp.int32)
    type_embeddings = jax.random.normal(dk[3], (B, S, HIDDEN), jnp.float32) * 0.1
    img_masks = jax.random.randint(dk[4], (B, S), 0, 2, jnp.int32)

    # flatten to [N, F] token layout; fat streams live in HBM as bf16 (glue)
    img_feat_f = img_feat.reshape(N, IMG_DIM).astype(jnp.bfloat16)
    type_f = type_embeddings.reshape(N, HIDDEN).astype(jnp.bfloat16)
    pos_f = img_pos_feat.reshape(N, POS_DIM)
    pid_f = person_ids.reshape(N)
    mask_f = img_masks.reshape(N)

    out = image_roberta_image_embeddings(
        img_feat_f, pos_f, pid_f, type_f, mask_f, params, tile_n=TILE_N)
    out = jax.block_until_ready(out)

    ref = reference(img_feat_f, pos_f, pid_f, type_f, mask_f, params)
    assert out.shape == (N, HIDDEN)
    err = jnp.max(jnp.abs(out - ref))
    assert jnp.allclose(out, ref, atol=2e-4, rtol=2e-4), f"mismatch vs. JAX reference: {err}"

    print("KERNEL_OK")
</pallas_src>

<mosaic_0001>
module attributes {stable_mosaic.version = 11 : i64} {
  func.func @embeddings_kernel(%arg0: i32, %arg1: memref<32x128xbf16, #tpu.memory_space<vmem>>, %arg2: memref<32x8xf32, #tpu.memory_space<vmem>>, %arg3: memref<32x2xi32, #tpu.memory_space<vmem>>, %arg4: memref<32x128xbf16, #tpu.memory_space<vmem>>, %arg5: memref<1x128xf32, #tpu.memory_space<vmem>>, %arg6: memref<128x128xf32, #tpu.memory_space<vmem>>, %arg7: memref<1x128xf32, #tpu.memory_space<vmem>>, %arg8: memref<1x128xf32, #tpu.memory_space<vmem>>, %arg9: memref<1x128xf32, #tpu.memory_space<vmem>>, %arg10: memref<8x128xf32, #tpu.memory_space<vmem>>, %arg11: memref<1x128xf32, #tpu.memory_space<vmem>>, %arg12: memref<1x128xf32, #tpu.memory_space<vmem>>, %arg13: memref<1x128xf32, #tpu.memory_space<vmem>>, %arg14: memref<128x128xf32, #tpu.memory_space<vmem>>, %arg15: memref<1x128xf32, #tpu.memory_space<vmem>>, %arg16: memref<1x128xf32, #tpu.memory_space<vmem>>, %arg17: memref<1x128xf32, #tpu.memory_space<vmem>>, %arg18: memref<1x128xf32, #tpu.memory_space<vmem>>, %arg19: memref<32x128xf32, #tpu.memory_space<vmem>>) attributes {dimension_semantics = [#tpu.dimension_semantics<parallel>], iteration_bounds = array<i64: 4>, scalar_prefetch = 0 : i64, scratch_operands = 0 : i64, tpu.core_type = #tpu.core_type<tc>, window_params = [{transform_indices = @transform_0, window_bounds = array<i64: 32, 128>}, {transform_indices = @transform_1, window_bounds = array<i64: 32, 8>}, {transform_indices = @transform_2, window_bounds = array<i64: 32, 2>}, {transform_indices = @transform_3, window_bounds = array<i64: 32, 128>}, {pipeline_mode = #tpu.pipeline_mode<synchronous>, transform_indices = @transform_4, window_bounds = array<i64: 1, 128>}, {pipeline_mode = #tpu.pipeline_mode<synchronous>, transform_indices = @transform_5, window_bounds = array<i64: 128, 128>}, {pipeline_mode = #tpu.pipeline_mode<synchronous>, transform_indices = @transform_6, window_bounds = array<i64: 1, 128>}, {pipeline_mode = #tpu.pipeline_mode<synchronous>, transform_indices = @transform_7, window_bounds = array<i64: 1, 128>}, {pipeline_mode = #tpu.pipeline_mode<synchronous>, transform_indices = @transform_8, window_bounds = array<i64: 1, 128>}, {pipeline_mode = #tpu.pipeline_mode<synchronous>, transform_indices = @transform_9, window_bounds = array<i64: 8, 128>}, {pipeline_mode = #tpu.pipeline_mode<synchronous>, transform_indices = @transform_10, window_bounds = array<i64: 1, 128>}, {pipeline_mode = #tpu.pipeline_mode<synchronous>, transform_indices = @transform_11, window_bounds = array<i64: 1, 128>}, {pipeline_mode = #tpu.pipeline_mode<synchronous>, transform_indices = @transform_12, window_bounds = array<i64: 1, 128>}, {pipeline_mode = #tpu.pipeline_mode<synchronous>, transform_indices = @transform_13, window_bounds = array<i64: 128, 128>}, {pipeline_mode = #tpu.pipeline_mode<synchronous>, transform_indices = @transform_14, window_bounds = array<i64: 1, 128>}, {pipeline_mode = #tpu.pipeline_mode<synchronous>, transform_indices = @transform_15, window_bounds = array<i64: 1, 128>}, {pipeline_mode = #tpu.pipeline_mode<synchronous>, transform_indices = @transform_16, window_bounds = array<i64: 1, 128>}, {pipeline_mode = #tpu.pipeline_mode<synchronous>, transform_indices = @transform_17, window_bounds = array<i64: 1, 128>}, {transform_indices = @transform_18, window_bounds = array<i64: 32, 128>}]} {
    %0 = tpu.iota {dimensions = array<i32: 1>} : vector<32x128xi32>
    %c32_i32 = arith.constant 32 : i32
    %1 = vector.broadcast %c32_i32 : i32 to vector<32x128xi32>
    %2 = arith.cmpi slt, %0, %1 : vector<32x128xi32>
    %3 = arith.extui %2 : vector<32x128xi1> to vector<32x128xi32>
    %4 = arith.sitofp %3 : vector<32x128xi32> to vector<32x128xf32>
    %c0 = arith.constant 0 : index
    %c0_0 = arith.constant 0 : index
    %5 = vector.load %arg3[%c0, %c0_0] : memref<32x2xi32, #tpu.memory_space<vmem>>, vector<32x2xi32>
    %6 = vector.extract_strided_slice %5 {offsets = [0, 0], sizes = [32, 1], strides = [1, 1]} : vector<32x2xi32> to vector<32x1xi32>
    %7 = vector.extract_strided_slice %5 {offsets = [0, 1], sizes = [32, 1], strides = [1, 1]} : vector<32x2xi32> to vector<32x1xi32>
    %8 = arith.sitofp %7 : vector<32x1xi32> to vector<32x1xf32>
    %c0_1 = arith.constant 0 : index
    %c0_2 = arith.constant 0 : index
    %9 = vector.load %arg1[%c0_1, %c0_2] : memref<32x128xbf16, #tpu.memory_space<vmem>>, vector<32x128xbf16>
    %10 = arith.extf %9 : vector<32x128xbf16> to vector<32x128xf32>
    %c0_3 = arith.constant 0 : index
    %c0_4 = arith.constant 0 : index
    %11 = vector.load %arg5[%c0_3, %c0_4] : memref<1x128xf32, #tpu.memory_space<vmem>>, vector<1x128xf32>
    %12 = vector.broadcast %8 : vector<32x1xf32> to vector<32x128xf32>
    %13 = vector.broadcast %11 : vector<1x128xf32> to vector<32x128xf32>
    %14 = arith.mulf %12, %13 : vector<32x128xf32>
    %15 = arith.addf %10, %14 : vector<32x128xf32>
    %c0_5 = arith.constant 0 : index
    %c0_6 = arith.constant 0 : index
    %16 = vector.load %arg6[%c0_5, %c0_6] : memref<128x128xf32, #tpu.memory_space<vmem>>, vector<128x128xf32>
    %cst = arith.constant dense<0.000000e+00> : vector<32x128xf32>
    %17 = tpu.matmul %15, %16, %cst {dimension_numbers = #tpu.dot_dimension_numbers<[1], [0], [0], [1], [0, 0, 1, 1], [], []>, precision = #tpu.contract_precision<fp32>} : vector<32x128xf32>, vector<128x128xf32>, vector<32x128xf32> -> vector<32x128xf32>
    %c0_7 = arith.constant 0 : index
    %c0_8 = arith.constant 0 : index
    %18 = vector.load %arg7[%c0_7, %c0_8] : memref<1x128xf32, #tpu.memory_space<vmem>>, vector<1x128xf32>
    %19 = vector.broadcast %18 : vector<1x128xf32> to vector<32x128xf32>
    %20 = arith.addf %17, %19 : vector<32x128xf32>
    %c0_9 = arith.constant 0 : index
    %c0_10 = arith.constant 0 : index
    %21 = vector.load %arg8[%c0_9, %c0_10] : memref<1x128xf32, #tpu.memory_space<vmem>>, vector<1x128xf32>
    %c0_11 = arith.constant 0 : index
    %c0_12 = arith.constant 0 : index
    %22 = vector.load %arg9[%c0_11, %c0_12] : memref<1x128xf32, #tpu.memory_space<vmem>>, vector<1x128xf32>
    %cst_13 = arith.constant dense<0.000000e+00> : vector<32xf32>
    %23 = vector.multi_reduction <add>, %20, %cst_13 [1] : vector<32x128xf32> to vector<32xf32>
    %24 = vector.shape_cast %23 : vector<32xf32> to vector<32x1xf32>
    %cst_14 = arith.constant 3.125000e-02 : f32
    %25 = vector.broadcast %cst_14 : f32 to vector<32x1xf32>
    %26 = arith.mulf %24, %25 : vector<32x1xf32>
    %27 = vector.broadcast %26 : vector<32x1xf32> to vector<32x128xf32>
    %28 = arith.subf %20, %27 : vector<32x128xf32>
    %29 = arith.mulf %28, %4 : vector<32x128xf32>
    %30 = arith.mulf %29, %29 : vector<32x128xf32>
    %cst_15 = arith.constant dense<0.000000e+00> : vector<32xf32>
    %31 = vector.multi_reduction <add>, %30, %cst_15 [1] : vector<32x128xf32> to vector<32xf32>
    %32 = vector.shape_cast %31 : vector<32xf32> to vector<32x1xf32>
    %cst_16 = arith.constant 3.125000e-02 : f32
    %33 = vector.broadcast %cst_16 : f32 to vector<32x1xf32>
    %34 = arith.mulf %32, %33 : vector<32x1xf32>
    %cst_17 = arith.constant 9.99999996E-13 : f32
    %35 = vector.broadcast %cst_17 : f32 to vector<32x1xf32>
    %36 = arith.addf %34, %35 : vector<32x1xf32>
    %37 = math.rsqrt %36 : vector<32x1xf32>
    %38 = vector.broadcast %37 : vector<32x1xf32> to vector<32x128xf32>
    %39 = arith.mulf %29, %38 : vector<32x128xf32>
    %40 = vector.broadcast %21 : vector<1x128xf32> to vector<32x128xf32>
    %41 = arith.mulf %39, %40 : vector<32x128xf32>
    %42 = vector.broadcast %22 : vector<1x128xf32> to vector<32x128xf32>
    %43 = arith.addf %41, %42 : vector<32x128xf32>
    %c0_18 = arith.constant 0 : index
    %c0_19 = arith.constant 0 : index
    %44 = vector.load %arg2[%c0_18, %c0_19] : memref<32x8xf32, #tpu.memory_space<vmem>>, vector<32x8xf32>
    %c0_20 = arith.constant 0 : index
    %c0_21 = arith.constant 0 : index
    %45 = vector.load %arg10[%c0_20, %c0_21] : memref<8x128xf32, #tpu.memory_space<vmem>>, vector<8x128xf32>
    %cst_22 = arith.constant dense<0.000000e+00> : vector<32x128xf32>
    %46 = tpu.matmul %44, %45, %cst_22 {dimension_numbers = #tpu.dot_dimension_numbers<[1], [0], [0], [1], [0, 0, 1, 1], [], []>, precision = #tpu.contract_precision<fp32>} : vector<32x8xf32>, vector<8x128xf32>, vector<32x128xf32> -> vector<32x128xf32>
    %c0_23 = arith.constant 0 : index
    %c0_24 = arith.constant 0 : index
    %47 = vector.load %arg11[%c0_23, %c0_24] : memref<1x128xf32, #tpu.memory_space<vmem>>, vector<1x128xf32>
    %48 = vector.broadcast %47 : vector<1x128xf32> to vector<32x128xf32>
    %49 = arith.addf %46, %48 : vector<32x128xf32>
    %c0_25 = arith.constant 0 : index
    %c0_26 = arith.constant 0 : index
    %50 = vector.load %arg12[%c0_25, %c0_26] : memref<1x128xf32, #tpu.memory_space<vmem>>, vector<1x128xf32>
    %c0_27 = arith.constant 0 : index
    %c0_28 = arith.constant 0 : index
    %51 = vector.load %arg13[%c0_27, %c0_28] : memref<1x128xf32, #tpu.memory_space<vmem>>, vector<1x128xf32>
    %cst_29 = arith.constant dense<0.000000e+00> : vector<32xf32>
    %52 = vector.multi_reduction <add>, %49, %cst_29 [1] : vector<32x128xf32> to vector<32xf32>
    %53 = vector.shape_cast %52 : vector<32xf32> to vector<32x1xf32>
    %cst_30 = arith.constant 3.125000e-02 : f32
    %54 = vector.broadcast %cst_30 : f32 to vector<32x1xf32>
    %55 = arith.mulf %53, %54 : vector<32x1xf32>
    %56 = vector.broadcast %55 : vector<32x1xf32> to vector<32x128xf32>
    %57 = arith.subf %49, %56 : vector<32x128xf32>
    %58 = arith.mulf %57, %4 : vector<32x128xf32>
    %59 = arith.mulf %58, %58 : vector<32x128xf32>
    %cst_31 = arith.constant dense<0.000000e+00> : vector<32xf32>
    %60 = vector.multi_reduction <add>, %59, %cst_31 [1] : vector<32x128xf32> to vector<32xf32>
    %61 = vector.shape_cast %60 : vector<32xf32> to vector<32x1xf32>
    %cst_32 = arith.constant 3.125000e-02 : f32
    %62 = vector.broadcast %cst_32 : f32 to vector<32x1xf32>
    %63 = arith.mulf %61, %62 : vector<32x1xf32>
    %cst_33 = arith.constant 9.99999996E-13 : f32
    %64 = vector.broadcast %cst_33 : f32 to vector<32x1xf32>
    %65 = arith.addf %63, %64 : vector<32x1xf32>
    %66 = math.rsqrt %65 : vector<32x1xf32>
    %67 = vector.broadcast %66 : vector<32x1xf32> to vector<32x128xf32>
    %68 = arith.mulf %58, %67 : vector<32x128xf32>
    %69 = vector.broadcast %50 : vector<1x128xf32> to vector<32x128xf32>
    %70 = arith.mulf %68, %69 : vector<32x128xf32>
    %71 = vector.broadcast %51 : vector<1x128xf32> to vector<32x128xf32>
    %72 = arith.addf %70, %71 : vector<32x128xf32>
    %73 = tpu.iota {dimensions = array<i32: 1>} : vector<32x128xi32>
    %74 = vector.broadcast %6 : vector<32x1xi32> to vector<32x128xi32>
    %75 = arith.cmpi eq, %74, %73 : vector<32x128xi32>
    %76 = arith.extui %75 : vector<32x128xi1> to vector<32x128xi32>
    %77 = arith.sitofp %76 : vector<32x128xi32> to vector<32x128xf32>
    %c0_34 = arith.constant 0 : index
    %c0_35 = arith.constant 0 : index
    %78 = vector.load %arg14[%c0_34, %c0_35] : memref<128x128xf32, #tpu.memory_space<vmem>>, vector<128x128xf32>
    %cst_36 = arith.constant dense<0.000000e+00> : vector<32x128xf32>
    %79 = tpu.matmul %77, %78, %cst_36 {dimension_numbers = #tpu.dot_dimension_numbers<[1], [0], [0], [1], [0, 0, 1, 1], [], []>, precision = #tpu.contract_precision<fp32>} : vector<32x128xf32>, vector<128x128xf32>, vector<32x128xf32> -> vector<32x128xf32>
    %c0_37 = arith.constant 0 : index
    %c0_38 = arith.constant 0 : index
    %80 = vector.load %arg15[%c0_37, %c0_38] : memref<1x128xf32, #tpu.memory_space<vmem>>, vector<1x128xf32>
    %c0_39 = arith.constant 0 : index
    %c0_40 = arith.constant 0 : index
    %81 = vector.load %arg16[%c0_39, %c0_40] : memref<1x128xf32, #tpu.memory_space<vmem>>, vector<1x128xf32>
    %cst_41 = arith.constant dense<0.000000e+00> : vector<32xf32>
    %82 = vector.multi_reduction <add>, %79, %cst_41 [1] : vector<32x128xf32> to vector<32xf32>
    %83 = vector.shape_cast %82 : vector<32xf32> to vector<32x1xf32>
    %cst_42 = arith.constant 3.125000e-02 : f32
    %84 = vector.broadcast %cst_42 : f32 to vector<32x1xf32>
    %85 = arith.mulf %83, %84 : vector<32x1xf32>
    %86 = vector.broadcast %85 : vector<32x1xf32> to vector<32x128xf32>
    %87 = arith.subf %79, %86 : vector<32x128xf32>
    %88 = arith.mulf %87, %4 : vector<32x128xf32>
    %89 = arith.mulf %88, %88 : vector<32x128xf32>
    %cst_43 = arith.constant dense<0.000000e+00> : vector<32xf32>
    %90 = vector.multi_reduction <add>, %89, %cst_43 [1] : vector<32x128xf32> to vector<32xf32>
    %91 = vector.shape_cast %90 : vector<32xf32> to vector<32x1xf32>
    %cst_44 = arith.constant 3.125000e-02 : f32
    %92 = vector.broadcast %cst_44 : f32 to vector<32x1xf32>
    %93 = arith.mulf %91, %92 : vector<32x1xf32>
    %cst_45 = arith.constant 9.99999996E-13 : f32
    %94 = vector.broadcast %cst_45 : f32 to vector<32x1xf32>
    %95 = arith.addf %93, %94 : vector<32x1xf32>
    %96 = math.rsqrt %95 : vector<32x1xf32>
    %97 = vector.broadcast %96 : vector<32x1xf32> to vector<32x128xf32>
    %98 = arith.mulf %88, %97 : vector<32x128xf32>
    %99 = vector.broadcast %80 : vector<1x128xf32> to vector<32x128xf32>
    %100 = arith.mulf %98, %99 : vector<32x128xf32>
    %101 = vector.broadcast %81 : vector<1x128xf32> to vector<32x128xf32>
    %102 = arith.addf %100, %101 : vector<32x128xf32>
    %c0_46 = arith.constant 0 : index
    %c0_47 = arith.constant 0 : index
    %103 = vector.load %arg4[%c0_46, %c0_47] : memref<32x128xbf16, #tpu.memory_space<vmem>>, vector<32x128xbf16>
    %104 = arith.extf %103 : vector<32x128xbf16> to vector<32x128xf32>
    %105 = arith.addf %43, %104 : vector<32x128xf32>
    %106 = arith.addf %105, %72 : vector<32x128xf32>
    %107 = arith.addf %106, %102 : vector<32x128xf32>
    %c0_48 = arith.constant 0 : index
    %c0_49 = arith.constant 0 : index
    %108 = vector.load %arg17[%c0_48, %c0_49] : memref<1x128xf32, #tpu.memory_space<vmem>>, vector<1x128xf32>
    %c0_50 = arith.constant 0 : index
    %c0_51 = arith.constant 0 : index
    %109 = vector.load %arg18[%c0_50, %c0_51] : memref<1x128xf32, #tpu.memory_space<vmem>>, vector<1x128xf32>
    %cst_52 = arith.constant dense<0.000000e+00> : vector<32xf32>
    %110 = vector.multi_reduction <add>, %107, %cst_52 [1] : vector<32x128xf32> to vector<32xf32>
    %111 = vector.shape_cast %110 : vector<32xf32> to vector<32x1xf32>
    %cst_53 = arith.constant 3.125000e-02 : f32
    %112 = vector.broadcast %cst_53 : f32 to vector<32x1xf32>
    %113 = arith.mulf %111, %112 : vector<32x1xf32>
    %114 = vector.broadcast %113 : vector<32x1xf32> to vector<32x128xf32>
    %115 = arith.subf %107, %114 : vector<32x128xf32>
    %116 = arith.mulf %115, %4 : vector<32x128xf32>
    %117 = arith.mulf %116, %116 : vector<32x128xf32>
    %cst_54 = arith.constant dense<0.000000e+00> : vector<32xf32>
    %118 = vector.multi_reduction <add>, %117, %cst_54 [1] : vector<32x128xf32> to vector<32xf32>
    %119 = vector.shape_cast %118 : vector<32xf32> to vector<32x1xf32>
    %cst_55 = arith.constant 3.125000e-02 : f32
    %120 = vector.broadcast %cst_55 : f32 to vector<32x1xf32>
    %121 = arith.mulf %119, %120 : vector<32x1xf32>
    %cst_56 = arith.constant 9.99999996E-13 : f32
    %122 = vector.broadcast %cst_56 : f32 to vector<32x1xf32>
    %123 = arith.addf %121, %122 : vector<32x1xf32>
    %124 = math.rsqrt %123 : vector<32x1xf32>
    %125 = vector.broadcast %124 : vector<32x1xf32> to vector<32x128xf32>
    %126 = arith.mulf %116, %125 : vector<32x128xf32>
    %127 = vector.broadcast %108 : vector<1x128xf32> to vector<32x128xf32>
    %128 = arith.mulf %126, %127 : vector<32x128xf32>
    %129 = vector.broadcast %109 : vector<1x128xf32> to vector<32x128xf32>
    %130 = arith.addf %128, %129 : vector<32x128xf32>
    %c0_57 = arith.constant 0 : index
    %c0_58 = arith.constant 0 : index
    %131 = vector.load %arg19[%c0_57, %c0_58] : memref<32x128xf32, #tpu.memory_space<vmem>>, vector<32x128xf32>
    tpu.vector_store %arg19[%c0_57, %c0_58], %130 {strides = array<i32>} : memref<32x128xf32, #tpu.memory_space<vmem>>, vector<32x128xf32>,
    return
  }
  func.func @transform_0(%arg0: i32) -> (i32, i32) {
    %c0_i32 = arith.constant 0 : i32
    %c0_i32_0 = arith.constant 0 : i32
    return %arg0, %c0_i32 : i32, i32
  }
  func.func @transform_1(%arg0: i32) -> (i32, i32) {
    %c0_i32 = arith.constant 0 : i32
    %c0_i32_0 = arith.constant 0 : i32
    return %arg0, %c0_i32 : i32, i32
  }
  func.func @transform_2(%arg0: i32) -> (i32, i32) {
    %c0_i32 = arith.constant 0 : i32
    %c0_i32_0 = arith.constant 0 : i32
    return %arg0, %c0_i32 : i32, i32
  }
  func.func @transform_3(%arg0: i32) -> (i32, i32) {
    %c0_i32 = arith.constant 0 : i32
    %c0_i32_0 = arith.constant 0 : i32
    return %arg0, %c0_i32 : i32, i32
  }
  func.func @transform_4(%arg0: i32) -> (i32, i32) {
    %c0_i32 = arith.constant 0 : i32
    %c0_i32_0 = arith.constant 0 : i32
    %c0_i32_1 = arith.constant 0 : i32
    return %c0_i32, %c0_i32_0 : i32, i32
  }
  func.func @transform_5(%arg0: i32) -> (i32, i32) {
    %c0_i32 = arith.constant 0 : i32
    %c0_i32_0 = arith.constant 0 : i32
    %c0_i32_1 = arith.constant 0 : i32
    return %c0_i32, %c0_i32_0 : i32, i32
  }
  func.func @transform_6(%arg0: i32) -> (i32, i32) {
    %c0_i32 = arith.constant 0 : i32
    %c0_i32_0 = arith.constant 0 : i32
    %c0_i32_1 = arith.constant 0 : i32
    return %c0_i32, %c0_i32_0 : i32, i32
  }
  func.func @transform_7(%arg0: i32) -> (i32, i32) {
    %c0_i32 = arith.constant 0 : i32
    %c0_i32_0 = arith.constant 0 : i32
    %c0_i32_1 = arith.constant 0 : i32
    return %c0_i32, %c0_i32_0 : i32, i32
  }
  func.func @transform_8(%arg0: i32) -> (i32, i32) {
    %c0_i32 = arith.constant 0 : i32
    %c0_i32_0 = arith.constant 0 : i32
    %c0_i32_1 = arith.constant 0 : i32
    return %c0_i32, %c0_i32_0 : i32, i32
  }
  func.func @transform_9(%arg0: i32) -> (i32, i32) {
    %c0_i32 = arith.constant 0 : i32
    %c0_i32_0 = arith.constant 0 : i32
    %c0_i32_1 = arith.constant 0 : i32
    return %c0_i32, %c0_i32_0 : i32, i32
  }
  func.func @transform_10(%arg0: i32) -> (i32, i32) {
    %c0_i32 = arith.constant 0 : i32
    %c0_i32_0 = arith.constant 0 : i32
    %c0_i32_1 = arith.constant 0 : i32
    return %c0_i32, %c0_i32_0 : i32, i32
  }
  func.func @transform_11(%arg0: i32) -> (i32, i32) {
    %c0_i32 = arith.constant 0 : i32
    %c0_i32_0 = arith.constant 0 : i32
    %c0_i32_1 = arith.constant 0 : i32
    return %c0_i32, %c0_i32_0 : i32, i32
  }
  func.func @transform_12(%arg0: i32) -> (i32, i32) {
    %c0_i32 = arith.constant 0 : i32
    %c0_i32_0 = arith.constant 0 : i32
    %c0_i32_1 = arith.constant 0 : i32
    return %c0_i32, %c0_i32_0 : i32, i32
  }
  func.func @transform_13(%arg0: i32) -> (i32, i32) {
    %c0_i32 = arith.constant 0 : i32
    %c0_i32_0 = arith.constant 0 : i32
    %c0_i32_1 = arith.constant 0 : i32
    return %c0_i32, %c0_i32_0 : i32, i32
  }
  func.func @transform_14(%arg0: i32) -> (i32, i32) {
    %c0_i32 = arith.constant 0 : i32
    %c0_i32_0 = arith.constant 0 : i32
    %c0_i32_1 = arith.constant 0 : i32
    return %c0_i32, %c0_i32_0 : i32, i32
  }
  func.func @transform_15(%arg0: i32) -> (i32, i32) {
    %c0_i32 = arith.constant 0 : i32
    %c0_i32_0 = arith.constant 0 : i32
    %c0_i32_1 = arith.constant 0 : i32
    return %c0_i32, %c0_i32_0 : i32, i32
  }
  func.func @transform_16(%arg0: i32) -> (i32, i32) {
    %c0_i32 = arith.constant 0 : i32
    %c0_i32_0 = arith.constant 0 : i32
    %c0_i32_1 = arith.constant 0 : i32
    return %c0_i32, %c0_i32_0 : i32, i32
  }
  func.func @transform_17(%arg0: i32) -> (i32, i32) {
    %c0_i32 = arith.constant 0 : i32
    %c0_i32_0 = arith.constant 0 : i32
    %c0_i32_1 = arith.constant 0 : i32
    return %c0_i32, %c0_i32_0 : i32, i32
  }
  func.func @transform_18(%arg0: i32) -> (i32, i32) {
    %c0_i32 = arith.constant 0 : i32
    %c0_i32_0 = arith.constant 0 : i32
    return %arg0, %c0_i32 : i32, i32
  }
}

</mosaic_0001>

<llo_original>
// kernel: tpu_custom_call.1
$region0: #{tpu_custom_call.1}
  #allocation0 [shape = 'u32[]', space=smem, size = 0x4, offset = 0x4, fixed_abs, tag = 'smem constant byte address 0x4 - core index']
  #allocation1 [shape = 'u32[72,128]{1,0:T(1,128)}', space=vmem, size = 0x9000, scoped, tag = 'internal scratch']
  %s0 = inlined_call_operand.hbm [shape: bf16[128,128], index: 0, kind: input, shape index: {}]
  %s1 = inlined_call_operand.vmem [shape: f32[128,8], index: 1, kind: input, shape index: {}]
  %s2 = inlined_call_operand.vmem [shape: s32[128,2], index: 2, kind: input, shape index: {}]
  %s3 = inlined_call_operand.hbm [shape: bf16[128,128], index: 3, kind: input, shape index: {}]
  %s4 = inlined_call_operand.vmem [shape: f32[1,128], index: 4, kind: input, shape index: {}]
  %s5 = inlined_call_operand.vmem [shape: f32[128,128], index: 5, kind: input, shape index: {}]
  %s6 = inlined_call_operand.vmem [shape: f32[1,128], index: 6, kind: input, shape index: {}]
  %s7 = inlined_call_operand.vmem [shape: f32[1,128], index: 7, kind: input, shape index: {}]
  %s8 = inlined_call_operand.vmem [shape: f32[1,128], index: 8, kind: input, shape index: {}]
  %s9 = inlined_call_operand.vmem [shape: f32[8,128], index: 9, kind: input, shape index: {}]
  %s10 = inlined_call_operand.vmem [shape: f32[1,128], index: 10, kind: input, shape index: {}]
  %s11 = inlined_call_operand.vmem [shape: f32[1,128], index: 11, kind: input, shape index: {}]
  %s12 = inlined_call_operand.vmem [shape: f32[1,128], index: 12, kind: input, shape index: {}]
  %s13 = inlined_call_operand.vmem [shape: f32[128,128], index: 13, kind: input, shape index: {}]
  %s14 = inlined_call_operand.vmem [shape: f32[1,128], index: 14, kind: input, shape index: {}]
  %s15 = inlined_call_operand.vmem [shape: f32[1,128], index: 15, kind: input, shape index: {}]
  %s16 = inlined_call_operand.vmem [shape: f32[1,128], index: 16, kind: input, shape index: {}]
  %s17 = inlined_call_operand.vmem [shape: f32[1,128], index: 17, kind: input, shape index: {}]
  %s18 = inlined_call_operand.hbm [shape: f32[128,128], index: 18, kind: output, shape index: {}]
  %s19 = sld [smem:[#allocation0]]
  $region113: #{tpu_custom_call.1} parent=0
    _
  %s21 = ssub.s32 1, %s19
  %s22 = scalar_select 0, %s21, %s19
  $region1: #{tpu_custom_call.1} parent=0
    #allocation2 [shape = 'u8[16384]{0}', space=vmem, size = 0x4000, scoped, tag = 'input window, operand 0']
    #allocation3 [shape = 's32[2]{0}', space=sflag, size = 0x8, scoped, tag = 'scoped memory for tpu_custom_call.1']
    #allocation4 [shape = 's32[2]{0}', space=sflag, size = 0x8, scoped, tag = 'scoped memory for tpu_custom_call.1']
    #allocation5 [shape = 'u8[16384]{0}', space=vmem, size = 0x4000, scoped, tag = 'input window, operand 3']
    #allocation6 [shape = 's32[2]{0}', space=sflag, size = 0x8, scoped, tag = 'scoped memory for tpu_custom_call.1']
    #allocation7 [shape = 'u8[32768]{0}', space=vmem, size = 0x8000, scoped, tag = 'output window, operand 0']
    %23 = vsyncpa [#allocation3], 0
    %s24 = scalar_lea.sflag [#allocation3], 1
    %25 = vsyncpa %s24, 0
    %26 = vsyncpa [#allocation6], 0
    %s27 = scalar_lea.sflag [#allocation6], 1
    %28 = vsyncpa %s27, 0
    %29 = vsyncpa [#allocation4], 0
    %s30 = scalar_lea.sflag [#allocation4], 1
    %31 = vsyncpa %s30, 0
    loop: start=0, step=1, limit=6
    $region2: #{tpu_custom_call.1} parent=1 // loop_pre_header
      _
    $region3: #{tpu_custom_call.1} parent=1 // loop_header
      %s33 = sphi 0, %s37
      %p34 = scmp.ge.s32.totalorder %s33, 6
      %s43 = sphi 0, %s45
      %s46 = sphi 0, %s43
      %s47 = sphi 0, %s46
      %s63 = sphi 0, %s47
      %s69 = sphi 0, %s71
      %s72 = sphi 0, %s69
      %s73 = sphi 0, %s72
      %s89 = sphi 0, %s73
      %s95 = sphi 0, %s97
      %s98 = sphi 0, %s95
      %s99 = sphi 0, %s98
      %s115 = sphi 0, %s99
      %s121 = sphi 0, %s123
      %s124 = sphi 0, %s121
      %s125 = sphi 0, %s124
      %s141 = sphi 0, %s125
      %s145 = sphi 0, %s145
      %s147 = sphi 0, %s145
      %s148 = sphi 0, %s147
      %s162 = sphi 0, %s148
      %s166 = sphi 0, %s166
      %s168 = sphi 0, %s166
      %s169 = sphi 0, %s168
      %s183 = sphi 0, %s169
      %s187 = sphi 0, %s187
      %s189 = sphi 0, %s187
      %s190 = sphi 0, %s189
      %s204 = sphi 0, %s190
      %s208 = sphi 0, %s208
      %s210 = sphi 0, %s208
      %s211 = sphi 0, %s210
      %s225 = sphi 0, %s211
      %s229 = sphi 0, %s229
      %s231 = sphi 0, %s229
      %s232 = sphi 0, %s231
      %s246 = sphi 0, %s232
      %s250 = sphi 0, %s250
      %s252 = sphi 0, %s250
      %s253 = sphi 0, %s252
      %s267 = sphi 0, %s253
      %s271 = sphi 0, %s271
      %s273 = sphi 0, %s271
      %s274 = sphi 0, %s273
      %s288 = sphi 0, %s274
      %s292 = sphi 0, %s292
      %s294 = sphi 0, %s292
      %s295 = sphi 0, %s294
      %s309 = sphi 0, %s295
      %s313 = sphi 0, %s313
      %s315 = sphi 0, %s313
      %s316 = sphi 0, %s315
      %s330 = sphi 0, %s316
      %s334 = sphi 0, %s334
      %s336 = sphi 0, %s334
      %s337 = sphi 0, %s336
      %s351 = sphi 0, %s337
      %s355 = sphi 0, %s355
      %s357 = sphi 0, %s355
      %s358 = sphi 0, %s357
      %s372 = sphi 0, %s358
      %s376 = sphi 0, %s376
      %s378 = sphi 0, %s376
      %s379 = sphi 0, %s378
      %s393 = sphi 0, %s379
      %s397 = sphi 0, %s397
      %s399 = sphi 0, %s397
      %s400 = sphi 0, %s399
      %s414 = sphi 0, %s400
      %s418 = sphi 0, %s418
      %s420 = sphi 0, %s418
      %s421 = sphi 0, %s420
      %s435 = sphi 0, %s421
      %s441 = sphi 0, %s443
      %s444 = sphi 0, %s441
      %s445 = sphi 0, %s444
      %s461 = sphi 0, %s445
    $region4: #{tpu_custom_call.1} parent=1 // loop_header_branch
      %36 = sbr.rel (%p34) target = $region8
    $region5: #{tpu_custom_call.1} parent=1 // loop_body
      %s38 = ssub.s32 %s33, 1
      %s39 = ssub.s32 %s33, 2
      %s40 = sadd.s32 %s33, 1
      %s41 = ssub.s32 %s33, %s40
      %p42 = scmp.eq.s32.totalorder %s41, 0
      %s44 = sadd.s32 %s43, 1
      %s45 = scalar_select %p42, %s43, %s44
      %p48 = pneg %p42
      %p49 = scmp.eq.s32.totalorder %s33, 3
      %p50 = por %p48, %p49
      %p51 = scmp.ne.s32.totalorder %s43, %s46
      %p52 = scmp.eq.s32.totalorder %s33, 0
      %p53 = por %p51, %p52
      %p54 = scmp.ne.s32.totalorder %s43, %s46
      %p55 = scmp.eq.s32.totalorder %s38, 3
      %p56 = por %p54, %p55
      %p57 = scmp.ne.s32.totalorder %s46, %s47
      %p58 = scmp.eq.s32.totalorder %s38, 0
      %p59 = por %p57, %p58
      %p60 = scmp.ne.s32.totalorder %s46, %s47
      %p61 = scmp.eq.s32.totalorder %s39, 3
      %p62 = por %p60, %p61
      %p64 = scmp.ne.s32.totalorder %s47, %s63
      %p65 = scmp.eq.s32.totalorder %s39, 0
      %p66 = por %p64, %p65
      %s67 = ssub.s32 %s33, %s40
      %p68 = scmp.eq.s32.totalorder %s67, 0
      %s70 = sadd.s32 %s69, 1
      %s71 = scalar_select %p68, %s69, %s70
      %p74 = pneg %p68
      %p75 = scmp.eq.s32.totalorder %s33, 3
      %p76 = por %p74, %p75
      %p77 = scmp.ne.s32.totalorder %s69, %s72
      %p78 = scmp.eq.s32.totalorder %s33, 0
      %p79 = por %p77, %p78
      %p80 = scmp.ne.s32.totalorder %s69, %s72
      %p81 = scmp.eq.s32.totalorder %s38, 3
      %p82 = por %p80, %p81
      %p83 = scmp.ne.s32.totalorder %s72, %s73
      %p84 = scmp.eq.s32.totalorder %s38, 0
      %p85 = por %p83, %p84
      %p86 = scmp.ne.s32.totalorder %s72, %s73
      %p87 = scmp.eq.s32.totalorder %s39, 3
      %p88 = por %p86, %p87
      %p90 = scmp.ne.s32.totalorder %s73, %s89
      %p91 = scmp.eq.s32.totalorder %s39, 0
      %p92 = por %p90, %p91
      %s93 = ssub.s32 %s33, %s40
      %p94 = scmp.eq.s32.totalorder %s93, 0
      %s96 = sadd.s32 %s95, 1
      %s97 = scalar_select %p94, %s95, %s96
      %p100 = pneg %p94
      %p101 = scmp.eq.s32.totalorder %s33, 3
      %p102 = por %p100, %p101
      %p103 = scmp.ne.s32.totalorder %s95, %s98
      %p104 = scmp.eq.s32.totalorder %s33, 0
      %p105 = por %p103, %p104
      %p106 = scmp.ne.s32.totalorder %s95, %s98
      %p107 = scmp.eq.s32.totalorder %s38, 3
      %p108 = por %p106, %p107
      %p109 = scmp.ne.s32.totalorder %s98, %s99
      %p110 = scmp.eq.s32.totalorder %s38, 0
      %p111 = por %p109, %p110
      %p112 = scmp.ne.s32.totalorder %s98, %s99
      %p113 = scmp.eq.s32.totalorder %s39, 3
      %p114 = por %p112, %p113
      %p116 = scmp.ne.s32.totalorder %s99, %s115
      %p117 = scmp.eq.s32.totalorder %s39, 0
      %p118 = por %p116, %p117
      %s119 = ssub.s32 %s33, %s40
      %p120 = scmp.eq.s32.totalorder %s119, 0
      %s122 = sadd.s32 %s121, 1
      %s123 = scalar_select %p120, %s121, %s122
      %p126 = pneg %p120
      %p127 = scmp.eq.s32.totalorder %s33, 3
      %p128 = por %p126, %p127
      %p129 = scmp.ne.s32.totalorder %s121, %s124
      %p130 = scmp.eq.s32.totalorder %s33, 0
      %p131 = por %p129, %p130
      %p132 = scmp.ne.s32.totalorder %s121, %s124
      %p133 = scmp.eq.s32.totalorder %s38, 3
      %p134 = por %p132, %p133
      %p135 = scmp.ne.s32.totalorder %s124, %s125
      %p136 = scmp.eq.s32.totalorder %s38, 0
      %p137 = por %p135, %p136
      %p138 = scmp.ne.s32.totalorder %s124, %s125
      %p139 = scmp.eq.s32.totalorder %s39, 3
      %p140 = por %p138, %p139
      %p142 = scmp.ne.s32.totalorder %s125, %s141
      %p143 = scmp.eq.s32.totalorder %s39, 0
      %p144 = por %p142, %p143
      %s146 = sadd.s32 %s145, 1
      %p149 = scmp.eq.s32.totalorder %s33, 3
      %p150 = scmp.ne.s32.totalorder %s145, %s147
      %p151 = scmp.eq.s32.totalorder %s33, 0
      %p152 = por %p150, %p151
      %p153 = scmp.ne.s32.totalorder %s145, %s147
      %p154 = scmp.eq.s32.totalorder %s38, 3
      %p155 = por %p153, %p154
      %p156 = scmp.ne.s32.totalorder %s147, %s148
      %p157 = scmp.eq.s32.totalorder %s38, 0
      %p158 = por %p156, %p157
      %p159 = scmp.ne.s32.totalorder %s147, %s148
      %p160 = scmp.eq.s32.totalorder %s39, 3
      %p161 = por %p159, %p160
      %p163 = scmp.ne.s32.totalorder %s148, %s162
      %p164 = scmp.eq.s32.totalorder %s39, 0
      %p165 = por %p163, %p164
      %s167 = sadd.s32 %s166, 1
      %p170 = scmp.eq.s32.totalorder %s33, 3
      %p171 = scmp.ne.s32.totalorder %s166, %s168
      %p172 = scmp.eq.s32.totalorder %s33, 0
      %p173 = por %p171, %p172
      %p174 = scmp.ne.s32.totalorder %s166, %s168
      %p175 = scmp.eq.s32.totalorder %s38, 3
      %p176 = por %p174, %p175
      %p177 = scmp.ne.s32.totalorder %s168, %s169
      %p178 = scmp.eq.s32.totalorder %s38, 0
      %p179 = por %p177, %p178
      %p180 = scmp.ne.s32.totalorder %s168, %s169
      %p181 = scmp.eq.s32.totalorder %s39, 3
      %p182 = por %p180, %p181
      %p184 = scmp.ne.s32.totalorder %s169, %s183
      %p185 = scmp.eq.s32.totalorder %s39, 0
      %p186 = por %p184, %p185
      %s188 = sadd.s32 %s187, 1
      %p191 = scmp.eq.s32.totalorder %s33, 3
      %p192 = scmp.ne.s32.totalorder %s187, %s189
      %p193 = scmp.eq.s32.totalorder %s33, 0
      %p194 = por %p192, %p193
      %p195 = scmp.ne.s32.totalorder %s187, %s189
      %p196 = scmp.eq.s32.totalorder %s38, 3
      %p197 = por %p195, %p196
      %p198 = scmp.ne.s32.totalorder %s189, %s190
      %p199 = scmp.eq.s32.totalorder %s38, 0
      %p200 = por %p198, %p199
      %p201 = scmp.ne.s32.totalorder %s189, %s190
      %p202 = scmp.eq.s32.totalorder %s39, 3
      %p203 = por %p201, %p202
      %p205 = scmp.ne.s32.totalorder %s190, %s204
      %p206 = scmp.eq.s32.totalorder %s39, 0
      %p207 = por %p205, %p206
      %s209 = sadd.s32 %s208, 1
      %p212 = scmp.eq.s32.totalorder %s33, 3
      %p213 = scmp.ne.s32.totalorder %s208, %s210
      %p214 = scmp.eq.s32.totalorder %s33, 0
      %p215 = por %p213, %p214
      %p216 = scmp.ne.s32.totalorder %s208, %s210
      %p217 = scmp.eq.s32.totalorder %s38, 3
      %p218 = por %p216, %p217
      %p219 = scmp.ne.s32.totalorder %s210, %s211
      %p220 = scmp.eq.s32.totalorder %s38, 0
      %p221 = por %p219, %p220
      %p222 = scmp.ne.s32.totalorder %s210, %s211
      %p223 = scmp.eq.s32.totalorder %s39, 3
      %p224 = por %p222, %p223
      %p226 = scmp.ne.s32.totalorder %s211, %s225
      %p227 = scmp.eq.s32.totalorder %s39, 0
      %p228 = por %p226, %p227
      %s230 = sadd.s32 %s229, 1
      %p233 = scmp.eq.s32.totalorder %s33, 3
      %p234 = scmp.ne.s32.totalorder %s229, %s231
      %p235 = scmp.eq.s32.totalorder %s33, 0
      %p236 = por %p234, %p235
      %p237 = scmp.ne.s32.totalorder %s229, %s231
      %p238 = scmp.eq.s32.totalorder %s38, 3
      %p239 = por %p237, %p238
      %p240 = scmp.ne.s32.totalorder %s231, %s232
      %p241 = scmp.eq.s32.totalorder %s38, 0
      %p242 = por %p240, %p241
      %p243 = scmp.ne.s32.totalorder %s231, %s232
      %p244 = scmp.eq.s32.totalorder %s39, 3
      %p245 = por %p243, %p244
      %p247 = scmp.ne.s32.totalorder %s232, %s246
      %p248 = scmp.eq.s32.totalorder %s39, 0
      %p249 = por %p247, %p248
      %s251 = sadd.s32 %s250, 1
      %p254 = scmp.eq.s32.totalorder %s33, 3
      %p255 = scmp.ne.s32.totalorder %s250, %s252
      %p256 = scmp.eq.s32.totalorder %s33, 0
      %p257 = por %p255, %p256
      %p258 = scmp.ne.s32.totalorder %s250, %s252
      %p259 = scmp.eq.s32.totalorder %s38, 3
      %p260 = por %p258, %p259
      %p261 = scmp.ne.s32.totalorder %s252, %s253
      %p262 = scmp.eq.s32.totalorder %s38, 0
      %p263 = por %p261, %p262
      %p264 = scmp.ne.s32.totalorder %s252, %s253
      %p265 = scmp.eq.s32.totalorder %s39, 3
      %p266 = por %p264, %p265
      %p268 = scmp.ne.s32.totalorder %s253, %s267
      %p269 = scmp.eq.s32.totalorder %s39, 0
      %p270 = por %p268, %p269
      %s272 = sadd.s32 %s271, 1
      %p275 = scmp.eq.s32.totalorder %s33, 3
      %p276 = scmp.ne.s32.totalorder %s271, %s273
      %p277 = scmp.eq.s32.totalorder %s33, 0
      %p278 = por %p276, %p277
      %p279 = scmp.ne.s32.totalorder %s271, %s273
      %p280 = scmp.eq.s32.totalorder %s38, 3
      %p281 = por %p279, %p280
      %p282 = scmp.ne.s32.totalorder %s273, %s274
      %p283 = scmp.eq.s32.totalorder %s38, 0
      %p284 = por %p282, %p283
      %p285 = scmp.ne.s32.totalorder %s273, %s274
      %p286 = scmp.eq.s32.totalorder %s39, 3
      %p287 = por %p285, %p286
      %p289 = scmp.ne.s32.totalorder %s274, %s288
      %p290 = scmp.eq.s32.totalorder %s39, 0
      %p291 = por %p289, %p290
      %s293 = sadd.s32 %s292, 1
      %p296 = scmp.eq.s32.totalorder %s33, 3
      %p297 = scmp.ne.s32.totalorder %s292, %s294
      %p298 = scmp.eq.s32.totalorder %s33, 0
      %p299 = por %p297, %p298
      %p300 = scmp.ne.s32.totalorder %s292, %s294
      %p301 = scmp.eq.s32.totalorder %s38, 3
      %p302 = por %p300, %p301
      %p303 = scmp.ne.s32.totalorder %s294, %s295
      %p304 = scmp.eq.s32.totalorder %s38, 0
      %p305 = por %p303, %p304
      %p306 = scmp.ne.s32.totalorder %s294, %s295
      %p307 = scmp.eq.s32.totalorder %s39, 3
      %p308 = por %p306, %p307
      %p310 = scmp.ne.s32.totalorder %s295, %s309
      %p311 = scmp.eq.s32.totalorder %s39, 0
      %p312 = por %p310, %p311
      %s314 = sadd.s32 %s313, 1
      %p317 = scmp.eq.s32.totalorder %s33, 3
      %p318 = scmp.ne.s32.totalorder %s313, %s315
      %p319 = scmp.eq.s32.totalorder %s33, 0
      %p320 = por %p318, %p319
      %p321 = scmp.ne.s32.totalorder %s313, %s315
      %p322 = scmp.eq.s32.totalorder %s38, 3
      %p323 = por %p321, %p322
      %p324 = scmp.ne.s32.totalorder %s315, %s316
      %p325 = scmp.eq.s32.totalorder %s38, 0
      %p326 = por %p324, %p325
      %p327 = scmp.ne.s32.totalorder %s315, %s316
      %p328 = scmp.eq.s32.totalorder %s39, 3
      %p329 = por %p327, %p328
      %p331 = scmp.ne.s32.totalorder %s316, %s330
      %p332 = scmp.eq.s32.totalorder %s39, 0
      %p333 = por %p331, %p332
      %s335 = sadd.s32 %s334, 1
      %p338 = scmp.eq.s32.totalorder %s33, 3
      %p339 = scmp.ne.s32.totalorder %s334, %s336
      %p340 = scmp.eq.s32.totalorder %s33, 0
      %p341 = por %p339, %p340
      %p342 = scmp.ne.s32.totalorder %s334, %s336
      %p343 = scmp.eq.s32.totalorder %s38, 3
      %p344 = por %p342, %p343
      %p345 = scmp.ne.s32.totalorder %s336, %s337
      %p346 = scmp.eq.s32.totalorder %s38, 0
      %p347 = por %p345, %p346
      %p348 = scmp.ne.s32.totalorder %s336, %s337
      %p349 = scmp.eq.s32.totalorder %s39, 3
      %p350 = por %p348, %p349
      %p352 = scmp.ne.s32.totalorder %s337, %s351
      %p353 = scmp.eq.s32.totalorder %s39, 0
      %p354 = por %p352, %p353
      %s356 = sadd.s32 %s355, 1
      %p359 = scmp.eq.s32.totalorder %s33, 3
      %p360 = scmp.ne.s32.totalorder %s355, %s357
      %p361 = scmp.eq.s32.totalorder %s33, 0
      %p362 = por %p360, %p361
      %p363 = scmp.ne.s32.totalorder %s355, %s357
      %p364 = scmp.eq.s32.totalorder %s38, 3
      %p365 = por %p363, %p364
      %p366 = scmp.ne.s32.totalorder %s357, %s358
      %p367 = scmp.eq.s32.totalorder %s38, 0
      %p368 = por %p366, %p367
      %p369 = scmp.ne.s32.totalorder %s357, %s358
      %p370 = scmp.eq.s32.totalorder %s39, 3
      %p371 = por %p369, %p370
      %p373 = scmp.ne.s32.totalorder %s358, %s372
      %p374 = scmp.eq.s32.totalorder %s39, 0
      %p375 = por %p373, %p374
      %s377 = sadd.s32 %s376, 1
      %p380 = scmp.eq.s32.totalorder %s33, 3
      %p381 = scmp.ne.s32.totalorder %s376, %s378
      %p382 = scmp.eq.s32.totalorder %s33, 0
      %p383 = por %p381, %p382
      %p384 = scmp.ne.s32.totalorder %s376, %s378
      %p385 = scmp.eq.s32.totalorder %s38, 3
      %p386 = por %p384, %p385
      %p387 = scmp.ne.s32.totalorder %s378, %s379
      %p388 = scmp.eq.s32.totalorder %s38, 0
      %p389 = por %p387, %p388
      %p390 = scmp.ne.s32.totalorder %s378, %s379
      %p391 = scmp.eq.s32.totalorder %s39, 3
      %p392 = por %p390, %p391
      %p394 = scmp.ne.s32.totalorder %s379, %s393
      %p395 = scmp.eq.s32.totalorder %s39, 0
      %p396 = por %p394, %p395
      %s398 = sadd.s32 %s397, 1
      %p401 = scmp.eq.s32.totalorder %s33, 3
      %p402 = scmp.ne.s32.totalorder %s397, %s399
      %p403 = scmp.eq.s32.totalorder %s33, 0
      %p404 = por %p402, %p403
      %p405 = scmp.ne.s32.totalorder %s397, %s399
      %p406 = scmp.eq.s32.totalorder %s38, 3
      %p407 = por %p405, %p406
      %p408 = scmp.ne.s32.totalorder %s399, %s400
      %p409 = scmp.eq.s32.totalorder %s38, 0
      %p410 = por %p408, %p409
      %p411 = scmp.ne.s32.totalorder %s399, %s400
      %p412 = scmp.eq.s32.totalorder %s39, 3
      %p413 = por %p411, %p412
      %p415 = scmp.ne.s32.totalorder %s400, %s414
      %p416 = scmp.eq.s32.totalorder %s39, 0
      %p417 = por %p415, %p416
      %s419 = sadd.s32 %s418, 1
      %p422 = scmp.eq.s32.totalorder %s33, 3
      %p423 = scmp.ne.s32.totalorder %s418, %s420
      %p424 = scmp.eq.s32.totalorder %s33, 0
      %p425 = por %p423, %p424
      %p426 = scmp.ne.s32.totalorder %s418, %s420
      %p427 = scmp.eq.s32.totalorder %s38, 3
      %p428 = por %p426, %p427
      %p429 = scmp.ne.s32.totalorder %s420, %s421
      %p430 = scmp.eq.s32.totalorder %s38, 0
      %p431 = por %p429, %p430
      %p432 = scmp.ne.s32.totalorder %s420, %s421
      %p433 = scmp.eq.s32.totalorder %s39, 3
      %p434 = por %p432, %p433
      %p436 = scmp.ne.s32.totalorder %s421, %s435
      %p437 = scmp.eq.s32.totalorder %s39, 0
      %p438 = por %p436, %p437
      %s439 = ssub.s32 %s33, %s40
      %p440 = scmp.eq.s32.totalorder %s439, 0
      %s442 = sadd.s32 %s441, 1
      %s443 = scalar_select %p440, %s441, %s442
      %p446 = pneg %p440
      %p447 = scmp.eq.s32.totalorder %s33, 3
      %p448 = por %p446, %p447
      %p449 = scmp.ne.s32.totalorder %s441, %s444
      %p450 = scmp.eq.s32.totalorder %s33, 0
      %p451 = por %p449, %p450
      %p452 = scmp.ne.s32.totalorder %s441, %s444
      %p453 = scmp.eq.s32.totalorder %s38, 3
      %p454 = por %p452, %p453
      %p455 = scmp.ne.s32.totalorder %s444, %s445
      %p456 = scmp.eq.s32.totalorder %s38, 0
      %p457 = por %p455, %p456
      %p458 = scmp.ne.s32.totalorder %s444, %s445
      %p459 = scmp.eq.s32.totalorder %s39, 3
      %p460 = por %p458, %p459
      %p462 = scmp.ne.s32.totalorder %s445, %s461
      %p463 = scmp.eq.s32.totalorder %s39, 0
      %p464 = por %p462, %p463
      %p465 = scmp.le.s32.totalorder 1, %s33
      %p466 = scmp.lt.s32.totalorder %s33, 5
      %p467 = pnand %p465, %p466
      %p468 = pneg %p467
      // Predicated region
      $region9: #{tpu_custom_call.1} parent=5 // pred_check
        _
      $region10: #{tpu_custom_call.1} parent=5 // pred_check_branch
        %470 = sbr.rel (%p467) target = $region12
      $region11: #{tpu_custom_call.1} parent=5 // pred_region
        %s471 = ssub.s32 %s33, 1
        // Predicated region
        $region13: #{tpu_custom_call.1} parent=11 // pred_check
          %p472 = pneg %p158
        $region14: #{tpu_custom_call.1} parent=11 // pred_check_branch
          %474 = sbr.rel (%p472) target = $region16
        $region15: #{tpu_custom_call.1} parent=11 // pred_region
          _
        $region16: #{tpu_custom_call.1} parent=11 // pred_fallthru
          _
        // Predicated region
        $region17: #{tpu_custom_call.1} parent=11 // pred_check
          %p475 = pneg %p179
        $region18: #{tpu_custom_call.1} parent=11 // pred_check_branch
          %477 = sbr.rel (%p475) target = $region20
        $region19: #{tpu_custom_call.1} parent=11 // pred_region
          _
        $region20: #{tpu_custom_call.1} parent=11 // pred_fallthru
          _
        // Predicated region
        $region21: #{tpu_custom_call.1} parent=11 // pred_check
          %p478 = pneg %p200
        $region22: #{tpu_custom_call.1} parent=11 // pred_check_branch
          %480 = sbr.rel (%p478) target = $region24
        $region23: #{tpu_custom_call.1} parent=11 // pred_region
          _
        $region24: #{tpu_custom_call.1} parent=11 // pred_fallthru
          _
        // Predicated region
        $region25: #{tpu_custom_call.1} parent=11 // pred_check
          %p481 = pneg %p221
        $region26: #{tpu_custom_call.1} parent=11 // pred_check_branch
          %483 = sbr.rel (%p481) target = $region28
        $region27: #{tpu_custom_call.1} parent=11 // pred_region
          _
        $region28: #{tpu_custom_call.1} parent=11 // pred_fallthru
          _
        // Predicated region
        $region29: #{tpu_custom_call.1} parent=11 // pred_check
          %p484 = pneg %p242
        $region30: #{tpu_custom_call.1} parent=11 // pred_check_branch
          %486 = sbr.rel (%p484) target = $region32
        $region31: #{tpu_custom_call.1} parent=11 // pred_region
          _
        $region32: #{tpu_custom_call.1} parent=11 // pred_fallthru
          _
        // Predicated region
        $region33: #{tpu_custom_call.1} parent=11 // pred_check
          %p487 = pneg %p263
        $region34: #{tpu_custom_call.1} parent=11 // pred_check_branch
          %489 = sbr.rel (%p487) target = $region36
        $region35: #{tpu_custom_call.1} parent=11 // pred_region
          _
        $region36: #{tpu_custom_call.1} parent=11 // pred_fallthru
          _
        // Predicated region
        $region37: #{tpu_custom_call.1} parent=11 // pred_check
          %p490 = pneg %p284
        $region38: #{tpu_custom_call.1} parent=11 // pred_check_branch
          %492 = sbr.rel (%p490) target = $region40
        $region39: #{tpu_custom_call.1} parent=11 // pred_region
          _
        $region40: #{tpu_custom_call.1} parent=11 // pred_fallthru
          _
        // Predicated region
        $region41: #{tpu_custom_call.1} parent=11 // pred_check
          %p493 = pneg %p305
        $region42: #{tpu_custom_call.1} parent=11 // pred_check_branch
          %495 = sbr.rel (%p493) target = $region44
        $region43: #{tpu_custom_call.1} parent=11 // pred_region
          _
        $region44: #{tpu_custom_call.1} parent=11 // pred_fallthru
          _
        // Predicated region
        $region45: #{tpu_custom_call.1} parent=11 // pred_check
          %p496 = pneg %p326
        $region46: #{tpu_custom_call.1} parent=11 // pred_check_branch
          %498 = sbr.rel (%p496) target = $region48
        $region47: #{tpu_custom_call.1} parent=11 // pred_region
          _
        $region48: #{tpu_custom_call.1} parent=11 // pred_fallthru
          _
        // Predicated region
        $region49: #{tpu_custom_call.1} parent=11 // pred_check
          %p499 = pneg %p347
        $region50: #{tpu_custom_call.1} parent=11 // pred_check_branch
          %501 = sbr.rel (%p499) target = $region52
        $region51: #{tpu_custom_call.1} parent=11 // pred_region
          _
        $region52: #{tpu_custom_call.1} parent=11 // pred_fallthru
          _
        // Predicated region
        $region53: #{tpu_custom_call.1} parent=11 // pred_check
          %p502 = pneg %p368
        $region54: #{tpu_custom_call.1} parent=11 // pred_check_branch
          %504 = sbr.rel (%p502) target = $region56
        $region55: #{tpu_custom_call.1} parent=11 // pred_region
          _
        $region56: #{tpu_custom_call.1} parent=11 // pred_fallthru
          _
        // Predicated region
        $region57: #{tpu_custom_call.1} parent=11 // pred_check
          %p505 = pneg %p389
        $region58: #{tpu_custom_call.1} parent=11 // pred_check_branch
          %507 = sbr.rel (%p505) target = $region60
        $region59: #{tpu_custom_call.1} parent=11 // pred_region
          _
        $region60: #{tpu_custom_call.1} parent=11 // pred_fallthru
          _
        // Predicated region
        $region61: #{tpu_custom_call.1} parent=11 // pred_check
          %p508 = pneg %p410
        $region62: #{tpu_custom_call.1} parent=11 // pred_check_branch
          %510 = sbr.rel (%p508) target = $region64
        $region63: #{tpu_custom_call.1} parent=11 // pred_region
          _
        $region64: #{tpu_custom_call.1} parent=11 // pred_fallthru
          _
        // Predicated region
        $region65: #{tpu_custom_call.1} parent=11 // pred_check
          %p511 = pneg %p431
        $region66: #{tpu_custom_call.1} parent=11 // pred_check_branch
          %513 = sbr.rel (%p511) target = $region68
        $region67: #{tpu_custom_call.1} parent=11 // pred_region
          _
        $region68: #{tpu_custom_call.1} parent=11 // pred_fallthru
          _
      $region12: #{tpu_custom_call.1} parent=5 // pred_fallthru
        _
      %p514 = scmp.lt.s32.totalorder %s33, 4
      // Predicated region
      $region69: #{tpu_custom_call.1} parent=5 // pred_check
        %p515 = pneg %p514
      $region70: #{tpu_custom_call.1} parent=5 // pred_check_branch
        %517 = sbr.rel (%p515) target = $region72
      $region71: #{tpu_custom_call.1} parent=5 // pred_region
        // Predicated region
        $region73: #{tpu_custom_call.1} parent=71 // pred_check
          %p518 = pneg %p53
        $region74: #{tpu_custom_call.1} parent=71 // pred_check_branch
          %520 = sbr.rel (%p518) target = $region76
        $region75: #{tpu_custom_call.1} parent=71 // pred_region
          %s521 = sand.u32 %s43, 1
          %s522 = scalar_lea.sflag [#allocation3], %s521
          %s523 = sand.u32 %s43, 1
          %s524 = smul.addr %s523, 16
          %s525 = scalar_lea.vmem [#allocation2], %s524
          %s526 = smul.u32 4, %s33
          %528 = vsyncadd %s522, 0
          %s529 = smul.addr %s526, 4
          %s530 = scalar_lea.hbm %s0, %s529
          %s531 = sshll.u32 %s530, 4
          %s532 = int_to_ptr.hbm [resolvable:$true] %s531
          %s533 = sshll.u32 %s525, 4
          %s534 = int_to_ptr.vmem [resolvable:$true] %s533
          %539 = dma.hbm_to_vmem [thread:$0]  %s532, 256, %s534, %s522, 64, 64, 4
        $region76: #{tpu_custom_call.1} parent=71 // pred_fallthru
          _
        // Predicated region
        $region77: #{tpu_custom_call.1} parent=71 // pred_check
          %p540 = pneg %p79
        $region78: #{tpu_custom_call.1} parent=71 // pred_check_branch
          %542 = sbr.rel (%p540) target = $region80
        $region79: #{tpu_custom_call.1} parent=71 // pred_region
          %s543 = smul.u32 4, %s33
          %p544 = scmp.lt.s32.totalorder %s543, 15
          %s545 = scalar_select %p544, %s543, 15
          %s546 = smul.addr %s545, 8
          %s547 = scalar_lea.vmem %s1, %s546
          %s548 = smul.u32 4, %s33
        $region80: #{tpu_custom_call.1} parent=71 // pred_fallthru
          _
        // Predicated region
        $region81: #{tpu_custom_call.1} parent=71 // pred_check
          %p549 = pneg %p105
        $region82: #{tpu_custom_call.1} parent=71 // pred_check_branch
          %551 = sbr.rel (%p549) target = $region84
        $region83: #{tpu_custom_call.1} parent=71 // pred_region
          %s552 = smul.u32 4, %s33
          %p553 = scmp.lt.s32.totalorder %s552, 15
          %s554 = scalar_select %p553, %s552, 15
          %s555 = smul.addr %s554, 8
          %s556 = scalar_lea.vmem %s2, %s555
          %s557 = smul.u32 4, %s33
        $region84: #{tpu_custom_call.1} parent=71 // pred_fallthru
          _
        // Predicated region
        $region85: #{tpu_custom_call.1} parent=71 // pred_check
          %p558 = pneg %p131
        $region86: #{tpu_custom_call.1} parent=71 // pred_check_branch
          %560 = sbr.rel (%p558) target = $region88
        $region87: #{tpu_custom_call.1} parent=71 // pred_region
          %s561 = sand.u32 %s121, 1
          %s562 = scalar_lea.sflag [#allocation6], %s561
          %s563 = sand.u32 %s121, 1
          %s564 = smul.addr %s563, 16
          %s565 = scalar_lea.vmem [#allocation5], %s564
          %s566 = smul.u32 4, %s33
          %568 = vsyncadd %s562, 0
          %s569 = smul.addr %s566, 4
          %s570 = scalar_lea.hbm %s3, %s569
          %s571 = sshll.u32 %s570, 4
          %s572 = int_to_ptr.hbm [resolvable:$true] %s571
          %s573 = sshll.u32 %s565, 4
          %s574 = int_to_ptr.vmem [resolvable:$true] %s573
          %579 = dma.hbm_to_vmem [thread:$0]  %s572, 256, %s574, %s562, 64, 64, 4
        $region88: #{tpu_custom_call.1} parent=71 // pred_fallthru
          _
      $region72: #{tpu_custom_call.1} parent=5 // pred_fallthru
        _
      %p580 = scmp.le.s32.totalorder 1, %s33
      %p581 = scmp.lt.s32.totalorder %s33, 5
      %p582 = pnand %p580, %p581
      %p583 = pneg %p582
      // Predicated region
      $region89: #{tpu_custom_call.1} parent=5 // pred_check
        _
      $region90: #{tpu_custom_call.1} parent=5 // pred_check_branch
        %585 = sbr.rel (%p582) target = $region92
      $region91: #{tpu_custom_call.1} parent=5 // pred_region
        %s586 = ssub.s32 %s33, 1
        %s587 = sand.u32 %s46, 1
        %s588 = scalar_lea.sflag [#allocation3], %s587
        %s589 = sand.u32 %s46, 1
        %s590 = smul.addr %s589, 16
        %s591 = scalar_lea.vmem [#allocation2], %s590
        // Predicated region
        $region93: #{tpu_custom_call.1} parent=91 // pred_check
          %p592 = pneg %p59
        $region94: #{tpu_custom_call.1} parent=91 // pred_check_branch
          %594 = sbr.rel (%p592) target = $region96
        $region95: #{tpu_custom_call.1} parent=91 // pred_region
          %596 = dma.done %s588, 256
        $region96: #{tpu_custom_call.1} parent=91 // pred_fallthru
          _
        %s597 = sand.u32 %s124, 1
        %s598 = scalar_lea.sflag [#allocation6], %s597
        %s599 = sand.u32 %s124, 1
        %s600 = smul.addr %s599, 16
        %s601 = scalar_lea.vmem [#allocation5], %s600
        // Predicated region
        $region97: #{tpu_custom_call.1} parent=91 // pred_check
          %p602 = pneg %p137
        $region98: #{tpu_custom_call.1} parent=91 // pred_check_branch
          %604 = sbr.rel (%p602) target = $region100
        $region99: #{tpu_custom_call.1} parent=91 // pred_region
          %606 = dma.done %s598, 256
        $region100: #{tpu_custom_call.1} parent=91 // pred_fallthru
          _
        %s607 = sand.u32 %s46, 1
        %s608 = scalar_lea.sflag [#allocation3], %s607
        %s609 = sand.u32 %s46, 1
        %s610 = smul.addr %s609, 16
        %s611 = scalar_lea.vmem [#allocation2], %s610
        %p612 = pneg %p59
        %p613 = pneg %p56
        %s614 = smul.u32 4, %s38
        %p615 = scmp.lt.s32.totalorder %s614, 15
        %s616 = scalar_select %p615, %s614, 15
        %s617 = smul.addr %s616, 8
        %s618 = scalar_lea.vmem %s1, %s617
        %p619 = pneg %p85
        %p620 = pneg %p82
        %s621 = smul.u32 4, %s38
        %p622 = scmp.lt.s32.totalorder %s621, 15
        %s623 = scalar_select %p622, %s621, 15
        %s624 = smul.addr %s623, 8
        %s625 = scalar_lea.vmem %s2, %s624
        %p626 = pneg %p111
        %p627 = pneg %p108
        %s628 = sand.u32 %s124, 1
        %s629 = scalar_lea.sflag [#allocation6], %s628
        %s630 = sand.u32 %s124, 1
        %s631 = smul.addr %s630, 16
        %s632 = scalar_lea.vmem [#allocation5], %s631
        %p633 = pneg %p137
        %p634 = pneg %p134
        %p635 = pneg %p158
        %p636 = pneg %p155
        %p637 = pneg %p179
        %p638 = pneg %p176
        %p639 = pneg %p200
        %p640 = pneg %p197
        %p641 = pneg %p221
        %p642 = pneg %p218
        %p643 = pneg %p242
        %p644 = pneg %p239
        %p645 = pneg %p263
        %p646 = pneg %p260
        %p647 = pneg %p284
        %p648 = pneg %p281
        %p649 = pneg %p305
        %p650 = pneg %p302
        %p651 = pneg %p326
        %p652 = pneg %p323
        %p653 = pneg %p347
        %p654 = pneg %p344
        %p655 = pneg %p368
        %p656 = pneg %p365
        %p657 = pneg %p389
        %p658 = pneg %p386
        %p659 = pneg %p410
        %p660 = pneg %p407
        %p661 = pneg %p431
        %p662 = pneg %p428
        %p663 = pneg %p457
        %p664 = pneg %p454
        %s665 = sand.u32 %s444, 1
        %s666 = scalar_lea.sflag [#allocation4], %s665
        %s667 = sand.u32 %s444, 1
        %s668 = smul.addr %s667, 32
        %s669 = scalar_lea.vmem [#allocation7], %s668
        %s670 = smul.u32 4, %s38
        %s671 = smul.u32 4, %s38
        %p672 = scmp.lt.s32.totalorder %s671, 15
        %s673 = scalar_select %p672, %s671, 15
        %s674 = smul.addr %s673, 8
        %s675 = scalar_lea.vmem %s1, %s674
        %s676 = smul.u32 4, %s38
        %s677 = smul.u32 4, %s38
        %p678 = scmp.lt.s32.totalorder %s677, 15
        %s679 = scalar_select %p678, %s677, 15
        %s680 = smul.addr %s679, 8
        %s681 = scalar_lea.vmem %s2, %s680
        %s682 = smul.u32 4, %s38
        %s683 = smul.u32 4, %s38
        %s684 = smul.u32 4, %s38
        %v685 = vlaneseq
        %v686 = vand.u32 %v685, 127
        %vm687 = vcmp.lt.s32.totalorder %v686, 32
        %v688 = vsel %vm687, 1, 0
        %v689 = vcvt.s32.f32 %v688
        %v690 = vld [vmem:[%s681] sm:$0xff]
        %v691 = vld [vmem:[%s681 + $0x8] sm:$0xff]
        %v692 = vld [vmem:[%s681 + $0x10] sm:$0xff]
        %v693 = vld [vmem:[%s681 + $0x18] sm:$0xff]
        %v694 = vcvt.s32.f32 %v690
        %v695 = vcvt.s32.f32 %v691
        %v696 = vcvt.s32.f32 %v692
        %v697 = vcvt.s32.f32 %v693
        %v698 = vld [vmem:[%s591] sm:$0xf]
        %v699 = vld [vmem:[%s591 + $0x4] sm:$0xf]
        %v700 = vld [vmem:[%s591 + $0x8] sm:$0xf]
        %v701 = vld [vmem:[%s591 + $0xc] sm:$0xf]
        %v702 = vunpack.c.l.bf16 %v698
        %v703 = vunpack.c.l.bf16 %v699
        %v704 = vunpack.c.l.bf16 %v700
        %v705 = vunpack.c.l.bf16 %v701
        %v706 = vld [vmem:[%s4] sm:$0x1]
        %708 = vset.pattern.permute.xlu0 1
        %709 = vperm.xlu0 %708, %v694
        %v710 = vpop.permute.xlu0 %709
        %713 = vset.pattern.permute.xlu0 1
        %714 = vperm.xlu0 %713, %v695
        %v715 = vpop.permute.xlu0 %714
        %718 = vset.pattern.permute.xlu0 1
        %719 = vperm.xlu0 %718, %v696
        %v720 = vpop.permute.xlu0 %719
        %723 = vset.pattern.permute.xlu0 1
        %724 = vperm.xlu0 %723, %v697
        %v725 = vpop.permute.xlu0 %724
        %v728 = vperm.slane %v706, 0
        %v730 = vmul.f32 %v710, %v728
        %v731 = vmul.f32 %v715, %v728
        %v732 = vmul.f32 %v720, %v728
        %v733 = vmul.f32 %v725, %v728
        %v734 = vadd.f32 %v702, %v730
        %v735 = vadd.f32 %v703, %v731
        %v736 = vadd.f32 %v704, %v732
        %v737 = vadd.f32 %v705, %v733
        %v738 = vld [vmem:[%s5] sm:$0xff]
        %v739 = vld [vmem:[%s5 + $0x8] sm:$0xff]
        %v740 = vld [vmem:[%s5 + $0x10] sm:$0xff]
        %v741 = vld [vmem:[%s5 + $0x18] sm:$0xff]
        %v742 = vld [vmem:[%s5 + $0x20] sm:$0xff]
        %v743 = vld [vmem:[%s5 + $0x28] sm:$0xff]
        %v744 = vld [vmem:[%s5 + $0x30] sm:$0xff]
        %v745 = vld [vmem:[%s5 + $0x38] sm:$0xff]
        %v746 = vld [vmem:[%s5 + $0x40] sm:$0xff]
        %v747 = vld [vmem:[%s5 + $0x48] sm:$0xff]
        %v748 = vld [vmem:[%s5 + $0x50] sm:$0xff]
        %v749 = vld [vmem:[%s5 + $0x58] sm:$0xff]
        %v750 = vld [vmem:[%s5 + $0x60] sm:$0xff]
        %v751 = vld [vmem:[%s5 + $0x68] sm:$0xff]
        %v752 = vld [vmem:[%s5 + $0x70] sm:$0xff]
        %v753 = vld [vmem:[%s5 + $0x78] sm:$0xff]
        %v754 = vld [vmem:[%s6] sm:$0x1]
        %v756 = vperm.slane %v754, 0
        %v758 = vand.u32 %v753, 4294901760
        %759 = vmatpush.msra.mxu0 %v758
        %v760 = vand.u32 %v752, 4294901760
        %761 = vmatpush.msra.mxu0 %v760
        %v762 = vand.u32 %v751, 4294901760
        %763 = vmatpush.msra.mxu0 %v762
        %v764 = vand.u32 %v750, 4294901760
        %765 = vmatpush.msra.mxu0 %v764
        %v766 = vand.u32 %v749, 4294901760
        %767 = vmatpush.msra.mxu0 %v766
        %v768 = vand.u32 %v748, 4294901760
        %769 = vmatpush.msra.mxu0 %v768
        %v770 = vand.u32 %v747, 4294901760
        %771 = vmatpush.msra.mxu0 %v770
        %v772 = vand.u32 %v746, 4294901760
        %773 = vmatpush.msra.mxu0 %v772
        %v774 = vand.u32 %v745, 4294901760
        %775 = vmatpush.msra.mxu0 %v774
        %v776 = vand.u32 %v744, 4294901760
        %777 = vmatpush.msra.mxu0 %v776
        %v778 = vand.u32 %v743, 4294901760
        %779 = vmatpush.msra.mxu0 %v778
        %v780 = vand.u32 %v742, 4294901760
        %781 = vmatpush.msra.mxu0 %v780
        %v782 = vand.u32 %v741, 4294901760
        %783 = vmatpush.msra.mxu0 %v782
        %v784 = vand.u32 %v740, 4294901760
        %785 = vmatpush.msra.mxu0 %v784
        %v786 = vand.u32 %v739, 4294901760
        %787 = vmatpush.msra.mxu0 %v786
        %v788 = vand.u32 %v738, 4294901760
        %789 = vmatpush.msra.mxu0 %v788
        %v790 = vand.u32 %v734, 4294901760
        %v791 = vsub.f32 %v734, %v790
        %v792 = vand.u32 %v791, 4294901760
        %v793 = vsub.f32 %v791, %v792
        %v794 = vand.u32 %v793, 4294901760
        %795 = vmatmul.f32.gmra.mxu0 %v794
        %v796 = vpop.f32.mrf.mxu0
        %v797 = vadd.f32 %v756, %v796
        %v798 = vand.u32 %v735, 4294901760
        %v799 = vsub.f32 %v735, %v798
        %v800 = vand.u32 %v799, 4294901760
        %v801 = vsub.f32 %v799, %v800
        %v802 = vand.u32 %v801, 4294901760
        %803 = vmatmul.f32.gmra.mxu0 %v802
        %v804 = vpop.f32.mrf.mxu0
        %v805 = vadd.f32 %v756, %v804
        %v806 = vand.u32 %v736, 4294901760
        %v807 = vsub.f32 %v736, %v806
        %v808 = vand.u32 %v807, 4294901760
        %v809 = vsub.f32 %v807, %v808
        %v810 = vand.u32 %v809, 4294901760
        %811 = vmatmul.f32.gmra.mxu0 %v810
        %v812 = vpop.f32.mrf.mxu0
        %v813 = vadd.f32 %v756, %v812
        %v814 = vand.u32 %v737, 4294901760
        %v815 = vsub.f32 %v737, %v814
        %v816 = vand.u32 %v815, 4294901760
        %v817 = vsub.f32 %v815, %v816
        %v818 = vand.u32 %v817, 4294901760
        %819 = vmatmul.f32.gmra.mxu0 %v818
        %v820 = vpop.f32.mrf.mxu0
        %v821 = vadd.f32 %v756, %v820
        %822 = vdwg.mxu0
        %v823 = vand.u32 %v753, 4294901760
        %v824 = vsub.f32 %v753, %v823
        %v825 = vand.u32 %v824, 4294901760
        %v826 = vsub.f32 %v824, %v825
        %v827 = vand.u32 %v826, 4294901760
        %828 = vmatpush.msra.mxu0 %v827
        %v829 = vand.u32 %v752, 4294901760
        %v830 = vsub.f32 %v752, %v829
        %v831 = vand.u32 %v830, 4294901760
        %v832 = vsub.f32 %v830, %v831
        %v833 = vand.u32 %v832, 4294901760
        %834 = vmatpush.msra.mxu0 %v833
        %v835 = vand.u32 %v751, 4294901760
        %v836 = vsub.f32 %v751, %v835
        %v837 = vand.u32 %v836, 4294901760
        %v838 = vsub.f32 %v836, %v837
        %v839 = vand.u32 %v838, 4294901760
        %840 = vmatpush.msra.mxu0 %v839
        %v841 = vand.u32 %v750, 4294901760
        %v842 = vsub.f32 %v750, %v841
        %v843 = vand.u32 %v842, 4294901760
        %v844 = vsub.f32 %v842, %v843
        %v845 = vand.u32 %v844, 4294901760
        %846 = vmatpush.msra.mxu0 %v845
        %v847 = vand.u32 %v749, 4294901760
        %v848 = vsub.f32 %v749, %v847
        %v849 = vand.u32 %v848, 4294901760
        %v850 = vsub.f32 %v848, %v849
        %v851 = vand.u32 %v850, 4294901760
        %852 = vmatpush.msra.mxu0 %v851
        %v853 = vand.u32 %v748, 4294901760
        %v854 = vsub.f32 %v748, %v853
        %v855 = vand.u32 %v854, 4294901760
        %v856 = vsub.f32 %v854, %v855
        %v857 = vand.u32 %v856, 4294901760
        %858 = vmatpush.msra.mxu0 %v857
        %v859 = vand.u32 %v747, 4294901760
        %v860 = vsub.f32 %v747, %v859
        %v861 = vand.u32 %v860, 4294901760
        %v862 = vsub.f32 %v860, %v861
        %v863 = vand.u32 %v862, 4294901760
        %864 = vmatpush.msra.mxu0 %v863
        %v865 = vand.u32 %v746, 4294901760
        %v866 = vsub.f32 %v746, %v865
        %v867 = vand.u32 %v866, 4294901760
        %v868 = vsub.f32 %v866, %v867
        %v869 = vand.u32 %v868, 4294901760
        %870 = vmatpush.msra.mxu0 %v869
        %v871 = vand.u32 %v745, 4294901760
        %v872 = vsub.f32 %v745, %v871
        %v873 = vand.u32 %v872, 4294901760
        %v874 = vsub.f32 %v872, %v873
        %v875 = vand.u32 %v874, 4294901760
        %876 = vmatpush.msra.mxu0 %v875
        %v877 = vand.u32 %v744, 4294901760
        %v878 = vsub.f32 %v744, %v877
        %v879 = vand.u32 %v878, 4294901760
        %v880 = vsub.f32 %v878, %v879
        %v881 = vand.u32 %v880, 4294901760
        %882 = vmatpush.msra.mxu0 %v881
        %v883 = vand.u32 %v743, 4294901760
        %v884 = vsub.f32 %v743, %v883
        %v885 = vand.u32 %v884, 4294901760
        %v886 = vsub.f32 %v884, %v885
        %v887 = vand.u32 %v886, 4294901760
        %888 = vmatpush.msra.mxu0 %v887
        %v889 = vand.u32 %v742, 4294901760
        %v890 = vsub.f32 %v742, %v889
        %v891 = vand.u32 %v890, 4294901760
        %v892 = vsub.f32 %v890, %v891
        %v893 = vand.u32 %v892, 4294901760
        %894 = vmatpush.msra.mxu0 %v893
        %v895 = vand.u32 %v741, 4294901760
        %v896 = vsub.f32 %v741, %v895
        %v897 = vand.u32 %v896, 4294901760
        %v898 = vsub.f32 %v896, %v897
        %v899 = vand.u32 %v898, 4294901760
        %900 = vmatpush.msra.mxu0 %v899
        %v901 = vand.u32 %v740, 4294901760
        %v902 = vsub.f32 %v740, %v901
        %v903 = vand.u32 %v902, 4294901760
        %v904 = vsub.f32 %v902, %v903
        %v905 = vand.u32 %v904, 4294901760
        %906 = vmatpush.msra.mxu0 %v905
        %v907 = vand.u32 %v739, 4294901760
        %v908 = vsub.f32 %v739, %v907
        %v909 = vand.u32 %v908, 4294901760
        %v910 = vsub.f32 %v908, %v909
        %v911 = vand.u32 %v910, 4294901760
        %912 = vmatpush.msra.mxu0 %v911
        %v913 = vand.u32 %v738, 4294901760
        %v914 = vsub.f32 %v738, %v913
        %v915 = vand.u32 %v914, 4294901760
        %v916 = vsub.f32 %v914, %v915
        %v917 = vand.u32 %v916, 4294901760
        %918 = vmatpush.msra.mxu0 %v917
        %v919 = vand.u32 %v734, 4294901760
        %920 = vmatmul.f32.gmra.mxu0 %v919
        %v921 = vpop.f32.mrf.mxu0
        %v922 = vadd.f32 %v797, %v921
        %v923 = vand.u32 %v735, 4294901760
        %924 = vmatmul.f32.gmra.mxu0 %v923
        %v925 = vpop.f32.mrf.mxu0
        %v926 = vadd.f32 %v805, %v925
        %v927 = vand.u32 %v736, 4294901760
        %928 = vmatmul.f32.gmra.mxu0 %v927
        %v929 = vpop.f32.mrf.mxu0
        %v930 = vadd.f32 %v813, %v929
        %v931 = vand.u32 %v737, 4294901760
        %932 = vmatmul.f32.gmra.mxu0 %v931
        %v933 = vpop.f32.mrf.mxu0
        %v934 = vadd.f32 %v821, %v933
        %935 = vdwg.mxu0
        %v936 = vand.u32 %v753, 4294901760
        %v937 = vsub.f32 %v753, %v936
        %938 = vmatpush.msra.mxu0 %v937
        %v939 = vand.u32 %v752, 4294901760
        %v940 = vsub.f32 %v752, %v939
        %941 = vmatpush.msra.mxu0 %v940
        %v942 = vand.u32 %v751, 4294901760
        %v943 = vsub.f32 %v751, %v942
        %944 = vmatpush.msra.mxu0 %v943
        %v945 = vand.u32 %v750, 4294901760
        %v946 = vsub.f32 %v750, %v945
        %947 = vmatpush.msra.mxu0 %v946
        %v948 = vand.u32 %v749, 4294901760
        %v949 = vsub.f32 %v749, %v948
        %950 = vmatpush.msra.mxu0 %v949
        %v951 = vand.u32 %v748, 4294901760
        %v952 = vsub.f32 %v748, %v951
        %953 = vmatpush.msra.mxu0 %v952
        %v954 = vand.u32 %v747, 4294901760
        %v955 = vsub.f32 %v747, %v954
        %956 = vmatpush.msra.mxu0 %v955
        %v957 = vand.u32 %v746, 4294901760
        %v958 = vsub.f32 %v746, %v957
        %959 = vmatpush.msra.mxu0 %v958
        %v960 = vand.u32 %v745, 4294901760
        %v961 = vsub.f32 %v745, %v960
        %962 = vmatpush.msra.mxu0 %v961
        %v963 = vand.u32 %v744, 4294901760
        %v964 = vsub.f32 %v744, %v963
        %965 = vmatpush.msra.mxu0 %v964
        %v966 = vand.u32 %v743, 4294901760
        %v967 = vsub.f32 %v743, %v966
        %968 = vmatpush.msra.mxu0 %v967
        %v969 = vand.u32 %v742, 4294901760
        %v970 = vsub.f32 %v742, %v969
        %971 = vmatpush.msra.mxu0 %v970
        %v972 = vand.u32 %v741, 4294901760
        %v973 = vsub.f32 %v741, %v972
        %974 = vmatpush.msra.mxu0 %v973
        %v975 = vand.u32 %v740, 4294901760
        %v976 = vsub.f32 %v740, %v975
        %977 = vmatpush.msra.mxu0 %v976
        %v978 = vand.u32 %v739, 4294901760
        %v979 = vsub.f32 %v739, %v978
        %980 = vmatpush.msra.mxu0 %v979
        %v981 = vand.u32 %v738, 4294901760
        %v982 = vsub.f32 %v738, %v981
        %983 = vmatpush.msra.mxu0 %v982
        %v984 = vand.u32 %v734, 4294901760
        %v985 = vsub.f32 %v734, %v984
        %986 = vmatmul.f32.gmra.mxu0 %v985
        %v987 = vpop.f32.mrf.mxu0
        %v988 = vadd.f32 %v922, %v987
        %v989 = vand.u32 %v735, 4294901760
        %v990 = vsub.f32 %v735, %v989
        %991 = vmatmul.f32.gmra.mxu0 %v990
        %v992 = vpop.f32.mrf.mxu0
        %v993 = vadd.f32 %v926, %v992
        %v994 = vand.u32 %v736, 4294901760
        %v995 = vsub.f32 %v736, %v994
        %996 = vmatmul.f32.gmra.mxu0 %v995
        %v997 = vpop.f32.mrf.mxu0
        %v998 = vadd.f32 %v930, %v997
        %v999 = vand.u32 %v737, 4294901760
        %v1000 = vsub.f32 %v737, %v999
        %1001 = vmatmul.f32.gmra.mxu0 %v1000
        %v1002 = vpop.f32.mrf.mxu0
        %v1003 = vadd.f32 %v934, %v1002
        %1004 = vdwg.mxu0
        %v1005 = vand.u32 %v753, 4294901760
        %1006 = vmatpush.msra.mxu0 %v1005
        %v1007 = vand.u32 %v752, 4294901760
        %1008 = vmatpush.msra.mxu0 %v1007
        %v1009 = vand.u32 %v751, 4294901760
        %1010 = vmatpush.msra.mxu0 %v1009
        %v1011 = vand.u32 %v750, 4294901760
        %1012 = vmatpush.msra.mxu0 %v1011
        %v1013 = vand.u32 %v749, 4294901760
        %1014 = vmatpush.msra.mxu0 %v1013
        %v1015 = vand.u32 %v748, 4294901760
        %1016 = vmatpush.msra.mxu0 %v1015
        %v1017 = vand.u32 %v747, 4294901760
        %1018 = vmatpush.msra.mxu0 %v1017
        %v1019 = vand.u32 %v746, 4294901760
        %1020 = vmatpush.msra.mxu0 %v1019
        %v1021 = vand.u32 %v745, 4294901760
        %1022 = vmatpush.msra.mxu0 %v1021
        %v1023 = vand.u32 %v744, 4294901760
        %1024 = vmatpush.msra.mxu0 %v1023
        %v1025 = vand.u32 %v743, 4294901760
        %1026 = vmatpush.msra.mxu0 %v1025
        %v1027 = vand.u32 %v742, 4294901760
        %1028 = vmatpush.msra.mxu0 %v1027
        %v1029 = vand.u32 %v741, 4294901760
        %1030 = vmatpush.msra.mxu0 %v1029
        %v1031 = vand.u32 %v740, 4294901760
        %1032 = vmatpush.msra.mxu0 %v1031
        %v1033 = vand.u32 %v739, 4294901760
        %1034 = vmatpush.msra.mxu0 %v1033
        %v1035 = vand.u32 %v738, 4294901760
        %1036 = vmatpush.msra.mxu0 %v1035
        %v1037 = vand.u32 %v734, 4294901760
        %v1038 = vsub.f32 %v734, %v1037
        %v1039 = vand.u32 %v1038, 4294901760
        %1040 = vmatmul.f32.gmra.mxu0 %v1039
        %v1041 = vpop.f32.mrf.mxu0
        %v1042 = vadd.f32 %v988, %v1041
        %v1043 = vand.u32 %v735, 4294901760
        %v1044 = vsub.f32 %v735, %v1043
        %v1045 = vand.u32 %v1044, 4294901760
        %1046 = vmatmul.f32.gmra.mxu0 %v1045
        %v1047 = vpop.f32.mrf.mxu0
        %v1048 = vadd.f32 %v993, %v1047
        %v1049 = vand.u32 %v736, 4294901760
        %v1050 = vsub.f32 %v736, %v1049
        %v1051 = vand.u32 %v1050, 4294901760
        %1052 = vmatmul.f32.gmra.mxu0 %v1051
        %v1053 = vpop.f32.mrf.mxu0
        %v1054 = vadd.f32 %v998, %v1053
        %v1055 = vand.u32 %v737, 4294901760
        %v1056 = vsub.f32 %v737, %v1055
        %v1057 = vand.u32 %v1056, 4294901760
        %1058 = vmatmul.f32.gmra.mxu0 %v1057
        %v1059 = vpop.f32.mrf.mxu0
        %v1060 = vadd.f32 %v1003, %v1059
        %1061 = vdwg.mxu0
        %v1062 = vand.u32 %v753, 4294901760
        %v1063 = vsub.f32 %v753, %v1062
        %v1064 = vand.u32 %v1063, 4294901760
        %1065 = vmatpush.msra.mxu0 %v1064
        %v1066 = vand.u32 %v752, 4294901760
        %v1067 = vsub.f32 %v752, %v1066
        %v1068 = vand.u32 %v1067, 4294901760
        %1069 = vmatpush.msra.mxu0 %v1068
        %v1070 = vand.u32 %v751, 4294901760
        %v1071 = vsub.f32 %v751, %v1070
        %v1072 = vand.u32 %v1071, 4294901760
        %1073 = vmatpush.msra.mxu0 %v1072
        %v1074 = vand.u32 %v750, 4294901760
        %v1075 = vsub.f32 %v750, %v1074
        %v1076 = vand.u32 %v1075, 4294901760
        %1077 = vmatpush.msra.mxu0 %v1076
        %v1078 = vand.u32 %v749, 4294901760
        %v1079 = vsub.f32 %v749, %v1078
        %v1080 = vand.u32 %v1079, 4294901760
        %1081 = vmatpush.msra.mxu0 %v1080
        %v1082 = vand.u32 %v748, 4294901760
        %v1083 = vsub.f32 %v748, %v1082
        %v1084 = vand.u32 %v1083, 4294901760
        %1085 = vmatpush.msra.mxu0 %v1084
        %v1086 = vand.u32 %v747, 4294901760
        %v1087 = vsub.f32 %v747, %v1086
        %v1088 = vand.u32 %v1087, 4294901760
        %1089 = vmatpush.msra.mxu0 %v1088
        %v1090 = vand.u32 %v746, 4294901760
        %v1091 = vsub.f32 %v746, %v1090
        %v1092 = vand.u32 %v1091, 4294901760
        %1093 = vmatpush.msra.mxu0 %v1092
        %v1094 = vand.u32 %v745, 4294901760
        %v1095 = vsub.f32 %v745, %v1094
        %v1096 = vand.u32 %v1095, 4294901760
        %1097 = vmatpush.msra.mxu0 %v1096
        %v1098 = vand.u32 %v744, 4294901760
        %v1099 = vsub.f32 %v744, %v1098
        %v1100 = vand.u32 %v1099, 4294901760
        %1101 = vmatpush.msra.mxu0 %v1100
        %v1102 = vand.u32 %v743, 4294901760
        %v1103 = vsub.f32 %v743, %v1102
        %v1104 = vand.u32 %v1103, 4294901760
        %1105 = vmatpush.msra.mxu0 %v1104
        %v1106 = vand.u32 %v742, 4294901760
        %v1107 = vsub.f32 %v742, %v1106
        %v1108 = vand.u32 %v1107, 4294901760
        %1109 = vmatpush.msra.mxu0 %v1108
        %v1110 = vand.u32 %v741, 4294901760
        %v1111 = vsub.f32 %v741, %v1110
        %v1112 = vand.u32 %v1111, 4294901760
        %1113 = vmatpush.msra.mxu0 %v1112
        %v1114 = vand.u32 %v740, 4294901760
        %v1115 = vsub.f32 %v740, %v1114
        %v1116 = vand.u32 %v1115, 4294901760
        %1117 = vmatpush.msra.mxu0 %v1116
        %v1118 = vand.u32 %v739, 4294901760
        %v1119 = vsub.f32 %v739, %v1118
        %v1120 = vand.u32 %v1119, 4294901760
        %1121 = vmatpush.msra.mxu0 %v1120
        %v1122 = vand.u32 %v738, 4294901760
        %v1123 = vsub.f32 %v738, %v1122
        %v1124 = vand.u32 %v1123, 4294901760
        %1125 = vmatpush.msra.mxu0 %v1124
        %v1126 = vand.u32 %v734, 4294901760
        %1127 = vmatmul.f32.gmra.mxu0 %v1126
        %v1128 = vpop.f32.mrf.mxu0
        %v1129 = vadd.f32 %v1042, %v1128
        %v1130 = vand.u32 %v735, 4294901760
        %1131 = vmatmul.f32.gmra.mxu0 %v1130
        %v1132 = vpop.f32.mrf.mxu0
        %v1133 = vadd.f32 %v1048, %v1132
        %v1134 = vand.u32 %v736, 4294901760
        %1135 = vmatmul.f32.gmra.mxu0 %v1134
        %v1136 = vpop.f32.mrf.mxu0
        %v1137 = vadd.f32 %v1054, %v1136
        %v1138 = vand.u32 %v737, 4294901760
        %1139 = vmatmul.f32.gmra.mxu0 %v1138
        %v1140 = vpop.f32.mrf.mxu0
        %v1141 = vadd.f32 %v1060, %v1140
        %1142 = vdwg.mxu0
        %v1143 = vand.u32 %v753, 4294901760
        %1144 = vmatpush.msra.mxu0 %v1143
        %v1145 = vand.u32 %v752, 4294901760
        %1146 = vmatpush.msra.mxu0 %v1145
        %v1147 = vand.u32 %v751, 4294901760
        %1148 = vmatpush.msra.mxu0 %v1147
        %v1149 = vand.u32 %v750, 4294901760
        %1150 = vmatpush.msra.mxu0 %v1149
        %v1151 = vand.u32 %v749, 4294901760
        %1152 = vmatpush.msra.mxu0 %v1151
        %v1153 = vand.u32 %v748, 4294901760
        %1154 = vmatpush.msra.mxu0 %v1153
        %v1155 = vand.u32 %v747, 4294901760
        %1156 = vmatpush.msra.mxu0 %v1155
        %v1157 = vand.u32 %v746, 4294901760
        %1158 = vmatpush.msra.mxu0 %v1157
        %v1159 = vand.u32 %v745, 4294901760
        %1160 = vmatpush.msra.mxu0 %v1159
        %v1161 = vand.u32 %v744, 4294901760
        %1162 = vmatpush.msra.mxu0 %v1161
        %v1163 = vand.u32 %v743, 4294901760
        %1164 = vmatpush.msra.mxu0 %v1163
        %v1165 = vand.u32 %v742, 4294901760
        %1166 = vmatpush.msra.mxu0 %v1165
        %v1167 = vand.u32 %v741, 4294901760
        %1168 = vmatpush.msra.mxu0 %v1167
        %v1169 = vand.u32 %v740, 4294901760
        %1170 = vmatpush.msra.mxu0 %v1169
        %v1171 = vand.u32 %v739, 4294901760
        %1172 = vmatpush.msra.mxu0 %v1171
        %v1173 = vand.u32 %v738, 4294901760
        %1174 = vmatpush.msra.mxu0 %v1173
        %v1175 = vand.u32 %v734, 4294901760
        %1176 = vmatmul.f32.gmra.mxu0 %v1175
        %v1177 = vpop.f32.mrf.mxu0
        %v1178 = vadd.f32 %v1129, %v1177
        %v1179 = vand.u32 %v735, 4294901760
        %1180 = vmatmul.f32.gmra.mxu0 %v1179
        %v1181 = vpop.f32.mrf.mxu0
        %v1182 = vadd.f32 %v1133, %v1181
        %v1183 = vand.u32 %v736, 4294901760
        %1184 = vmatmul.f32.gmra.mxu0 %v1183
        %v1185 = vpop.f32.mrf.mxu0
        %v1186 = vadd.f32 %v1137, %v1185
        %v1187 = vand.u32 %v737, 4294901760
        %1188 = vmatmul.f32.gmra.mxu0 %v1187
        %v1189 = vpop.f32.mrf.mxu0
        %v1190 = vadd.f32 %v1141, %v1189
        %1191 = vdwg.mxu0
        %v1192 = vld [vmem:[%s7] sm:$0x1]
        %v1193 = vld [vmem:[%s8] sm:$0x1]
        %1194 = vadd.xlane.f32.xlu0 %v1178
        %v1195 = vpop.xlane.xlu0 %1194
        %1196 = vadd.xlane.f32.xlu0 %v1182
        %v1197 = vpop.xlane.xlu0 %1196
        %1198 = vadd.xlane.f32.xlu0 %v1186
        %v1199 = vpop.xlane.xlu0 %1198
        %1200 = vadd.xlane.f32.xlu0 %v1190
        %v1201 = vpop.xlane.xlu0 %1200
        %v1202 = vmul.f32 %v1195, 0.03125
        %v1203 = vmul.f32 %v1197, 0.03125
        %v1204 = vmul.f32 %v1199, 0.03125
        %v1205 = vmul.f32 %v1201, 0.03125
        %v1206 = vsub.f32 %v1178, %v1202
        %v1207 = vsub.f32 %v1182, %v1203
        %v1208 = vsub.f32 %v1186, %v1204
        %v1209 = vsub.f32 %v1190, %v1205
        %v1210 = vmul.f32 %v1206, %v689
        %v1211 = vmul.f32 %v1207, %v689
        %v1212 = vmul.f32 %v1208, %v689
        %v1213 = vmul.f32 %v1209, %v689
        %v1214 = vmul.f32 %v1210, %v1210
        %v1215 = vmul.f32 %v1211, %v1211
        %v1216 = vmul.f32 %v1212, %v1212
        %v1217 = vmul.f32 %v1213, %v1213
        %1218 = vadd.xlane.f32.xlu0 %v1214
        %v1219 = vpop.xlane.xlu0 %1218
        %1220 = vadd.xlane.f32.xlu0 %v1215
        %v1221 = vpop.xlane.xlu0 %1220
        %1222 = vadd.xlane.f32.xlu0 %v1216
        %v1223 = vpop.xlane.xlu0 %1222
        %1224 = vadd.xlane.f32.xlu0 %v1217
        %v1225 = vpop.xlane.xlu0 %1224
        %v1226 = vmul.f32 %v1219, 0.03125
        %v1227 = vmul.f32 %v1221, 0.03125
        %v1228 = vmul.f32 %v1223, 0.03125
        %v1229 = vmul.f32 %v1225, 0.03125
        %v1230 = vadd.f32 %v1226, 1e-12
        %v1231 = vadd.f32 %v1227, 1e-12
        %v1232 = vadd.f32 %v1228, 1e-12
        %v1233 = vadd.f32 %v1229, 1e-12
        %v1234 = vrsqrt.pop %v1230
        %v1235 = vmul.f32 %v1234, %v1230
        %v1236 = vmul.f32 %v1235, %v1234
        %v1237 = vmul.f32 0.5, %v1236
        %v1238 = vsub.f32 1.5, %v1237
        %v1239 = vmul.f32 %v1234, %v1238
        %vm1240 = vweird.f32 %v1230
        %vm1241 = vweird.f32 %v1234
        %vm1242 = vmor %vm1240, %vm1241
        %v1243 = vsel %vm1242, %v1234, %v1239
        %v1244 = vrsqrt.pop %v1231
        %v1245 = vmul.f32 %v1244, %v1231
        %v1246 = vmul.f32 %v1245, %v1244
        %v1247 = vmul.f32 0.5, %v1246
        %v1248 = vsub.f32 1.5, %v1247
        %v1249 = vmul.f32 %v1244, %v1248
        %vm1250 = vweird.f32 %v1231
        %vm1251 = vweird.f32 %v1244
        %vm1252 = vmor %vm1250, %vm1251
        %v1253 = vsel %vm1252, %v1244, %v1249
        %v1254 = vrsqrt.pop %v1232
        %v1255 = vmul.f32 %v1254, %v1232
        %v1256 = vmul.f32 %v1255, %v1254
        %v1257 = vmul.f32 0.5, %v1256
        %v1258 = vsub.f32 1.5, %v1257
        %v1259 = vmul.f32 %v1254, %v1258
        %vm1260 = vweird.f32 %v1232
        %vm1261 = vweird.f32 %v1254
        %vm1262 = vmor %vm1260, %vm1261
        %v1263 = vsel %vm1262, %v1254, %v1259
        %v1264 = vrsqrt.pop %v1233
        %v1265 = vmul.f32 %v1264, %v1233
        %v1266 = vmul.f32 %v1265, %v1264
        %v1267 = vmul.f32 0.5, %v1266
        %v1268 = vsub.f32 1.5, %v1267
        %v1269 = vmul.f32 %v1264, %v1268
        %vm1270 = vweird.f32 %v1233
        %vm1271 = vweird.f32 %v1264
        %vm1272 = vmor %vm1270, %vm1271
        %v1273 = vsel %vm1272, %v1264, %v1269
        %v1274 = vmul.f32 %v1210, %v1243
        %v1275 = vmul.f32 %v1211, %v1253
        %v1276 = vmul.f32 %v1212, %v1263
        %v1277 = vmul.f32 %v1213, %v1273
        %v1279 = vperm.slane %v1192, 0
        %v1281 = vmul.f32 %v1274, %v1279
        %v1282 = vmul.f32 %v1275, %v1279
        %v1283 = vmul.f32 %v1276, %v1279
        %v1284 = vmul.f32 %v1277, %v1279
        %v1286 = vperm.slane %v1193, 0
        %v1288 = vadd.f32 %v1281, %v1286
        %v1289 = vadd.f32 %v1282, %v1286
        %v1290 = vadd.f32 %v1283, %v1286
        %v1291 = vadd.f32 %v1284, %v1286
        %v1292 = vld [vmem:[%s675] sm:$0xff]
        %v1293 = vld [vmem:[%s675 + $0x8] sm:$0xff]
        %v1294 = vld [vmem:[%s675 + $0x10] sm:$0xff]
        %v1295 = vld [vmem:[%s675 + $0x18] sm:$0xff]
        %v1296 = vld [vmem:[%s9] sm:$0xff]
        %v1297 = vld [vmem:[%s10] sm:$0x1]
        %v1299 = vperm.slane %v1297, 0
        %vm1301 = vcmask 64512
        %v1303 = vsel %vm1301, %v1292, 0
        %v1306 = vsel %vm1301, %v1293, 0
        %v1309 = vsel %vm1301, %v1294, 0
        %v1312 = vsel %vm1301, %v1295, 0
        %1314 = vmatpush.msra.mxu0 0.0
        %1315 = vmatpush.msra.mxu0 0.0
        %1316 = vmatpush.msra.mxu0 0.0
        %1317 = vmatpush.msra.mxu0 0.0
        %1318 = vmatpush.msra.mxu0 0.0
        %1319 = vmatpush.msra.mxu0 0.0
        %1320 = vmatpush.msra.mxu0 0.0
        %1321 = vmatpush.msra.mxu0 0.0
        %1322 = vmatpush.msra.mxu0 0.0
        %1323 = vmatpush.msra.mxu0 0.0
        %1324 = vmatpush.msra.mxu0 0.0
        %1325 = vmatpush.msra.mxu0 0.0
        %1326 = vmatpush.msra.mxu0 0.0
        %1327 = vmatpush.msra.mxu0 0.0
        %1328 = vmatpush.msra.mxu0 0.0
        %v1329 = vand.u32 %v1296, 4294901760
        %1330 = vmatpush.msra.mxu0 %v1329
        %v1331 = vand.u32 %v1303, 4294901760
        %v1332 = vsub.f32 %v1303, %v1331
        %v1333 = vand.u32 %v1332, 4294901760
        %v1334 = vsub.f32 %v1332, %v1333
        %v1335 = vand.u32 %v1334, 4294901760
        %1336 = vmatmul.f32.gmra.mxu0 %v1335
        %v1337 = vpop.f32.mrf.mxu0
        %v1338 = vadd.f32 %v1299, %v1337
        %v1339 = vand.u32 %v1306, 4294901760
        %v1340 = vsub.f32 %v1306, %v1339
        %v1341 = vand.u32 %v1340, 4294901760
        %v1342 = vsub.f32 %v1340, %v1341
        %v1343 = vand.u32 %v1342, 4294901760
        %1344 = vmatmul.f32.gmra.mxu0 %v1343
        %v1345 = vpop.f32.mrf.mxu0
        %v1346 = vadd.f32 %v1299, %v1345
        %v1347 = vand.u32 %v1309, 4294901760
        %v1348 = vsub.f32 %v1309, %v1347
        %v1349 = vand.u32 %v1348, 4294901760
        %v1350 = vsub.f32 %v1348, %v1349
        %v1351 = vand.u32 %v1350, 4294901760
        %1352 = vmatmul.f32.gmra.mxu0 %v1351
        %v1353 = vpop.f32.mrf.mxu0
        %v1354 = vadd.f32 %v1299, %v1353
        %v1355 = vand.u32 %v1312, 4294901760
        %v1356 = vsub.f32 %v1312, %v1355
        %v1357 = vand.u32 %v1356, 4294901760
        %v1358 = vsub.f32 %v1356, %v1357
        %v1359 = vand.u32 %v1358, 4294901760
        %1360 = vmatmul.f32.gmra.mxu0 %v1359
        %v1361 = vpop.f32.mrf.mxu0
        %v1362 = vadd.f32 %v1299, %v1361
        %1363 = vdwg.mxu0
        %1364 = vmatpush.msra.mxu0 0.0
        %1365 = vmatpush.msra.mxu0 0.0
        %1366 = vmatpush.msra.mxu0 0.0
        %1367 = vmatpush.msra.mxu0 0.0
        %1368 = vmatpush.msra.mxu0 0.0
        %1369 = vmatpush.msra.mxu0 0.0
        %1370 = vmatpush.msra.mxu0 0.0
        %1371 = vmatpush.msra.mxu0 0.0
        %1372 = vmatpush.msra.mxu0 0.0
        %1373 = vmatpush.msra.mxu0 0.0
        %1374 = vmatpush.msra.mxu0 0.0
        %1375 = vmatpush.msra.mxu0 0.0
        %1376 = vmatpush.msra.mxu0 0.0
        %1377 = vmatpush.msra.mxu0 0.0
        %1378 = vmatpush.msra.mxu0 0.0
        %v1379 = vand.u32 %v1296, 4294901760
        %v1380 = vsub.f32 %v1296, %v1379
        %v1381 = vand.u32 %v1380, 4294901760
        %v1382 = vsub.f32 %v1380, %v1381
        %v1383 = vand.u32 %v1382, 4294901760
        %1384 = vmatpush.msra.mxu0 %v1383
        %v1385 = vand.u32 %v1303, 4294901760
        %1386 = vmatmul.f32.gmra.mxu0 %v1385
        %v1387 = vpop.f32.mrf.mxu0
        %v1388 = vadd.f32 %v1338, %v1387
        %v1389 = vand.u32 %v1306, 4294901760
        %1390 = vmatmul.f32.gmra.mxu0 %v1389
        %v1391 = vpop.f32.mrf.mxu0
        %v1392 = vadd.f32 %v1346, %v1391
        %v1393 = vand.u32 %v1309, 4294901760
        %1394 = vmatmul.f32.gmra.mxu0 %v1393
        %v1395 = vpop.f32.mrf.mxu0
        %v1396 = vadd.f32 %v1354, %v1395
        %v1397 = vand.u32 %v1312, 4294901760
        %1398 = vmatmul.f32.gmra.mxu0 %v1397
        %v1399 = vpop.f32.mrf.mxu0
        %v1400 = vadd.f32 %v1362, %v1399
        %1401 = vdwg.mxu0
        %1402 = vmatpush.msra.mxu0 0.0
        %1403 = vmatpush.msra.mxu0 0.0
        %1404 = vmatpush.msra.mxu0 0.0
        %1405 = vmatpush.msra.mxu0 0.0
        %1406 = vmatpush.msra.mxu0 0.0
        %1407 = vmatpush.msra.mxu0 0.0
        %1408 = vmatpush.msra.mxu0 0.0
        %1409 = vmatpush.msra.mxu0 0.0
        %1410 = vmatpush.msra.mxu0 0.0
        %1411 = vmatpush.msra.mxu0 0.0
        %1412 = vmatpush.msra.mxu0 0.0
        %1413 = vmatpush.msra.mxu0 0.0
        %1414 = vmatpush.msra.mxu0 0.0
        %1415 = vmatpush.msra.mxu0 0.0
        %1416 = vmatpush.msra.mxu0 0.0
        %v1417 = vand.u32 %v1296, 4294901760
        %v1418 = vsub.f32 %v1296, %v1417
        %1419 = vmatpush.msra.mxu0 %v1418
        %v1420 = vand.u32 %v1303, 4294901760
        %v1421 = vsub.f32 %v1303, %v1420
        %1422 = vmatmul.f32.gmra.mxu0 %v1421
        %v1423 = vpop.f32.mrf.mxu0
        %v1424 = vadd.f32 %v1388, %v1423
        %v1425 = vand.u32 %v1306, 4294901760
        %v1426 = vsub.f32 %v1306, %v1425
        %1427 = vmatmul.f32.gmra.mxu0 %v1426
        %v1428 = vpop.f32.mrf.mxu0
        %v1429 = vadd.f32 %v1392, %v1428
        %v1430 = vand.u32 %v1309, 4294901760
        %v1431 = vsub.f32 %v1309, %v1430
        %1432 = vmatmul.f32.gmra.mxu0 %v1431
        %v1433 = vpop.f32.mrf.mxu0
        %v1434 = vadd.f32 %v1396, %v1433
        %v1435 = vand.u32 %v1312, 4294901760
        %v1436 = vsub.f32 %v1312, %v1435
        %1437 = vmatmul.f32.gmra.mxu0 %v1436
        %v1438 = vpop.f32.mrf.mxu0
        %v1439 = vadd.f32 %v1400, %v1438
        %1440 = vdwg.mxu0
        %1441 = vmatpush.msra.mxu0 0.0
        %1442 = vmatpush.msra.mxu0 0.0
        %1443 = vmatpush.msra.mxu0 0.0
        %1444 = vmatpush.msra.mxu0 0.0
        %1445 = vmatpush.msra.mxu0 0.0
        %1446 = vmatpush.msra.mxu0 0.0
        %1447 = vmatpush.msra.mxu0 0.0
        %1448 = vmatpush.msra.mxu0 0.0
        %1449 = vmatpush.msra.mxu0 0.0
        %1450 = vmatpush.msra.mxu0 0.0
        %1451 = vmatpush.msra.mxu0 0.0
        %1452 = vmatpush.msra.mxu0 0.0
        %1453 = vmatpush.msra.mxu0 0.0
        %1454 = vmatpush.msra.mxu0 0.0
        %1455 = vmatpush.msra.mxu0 0.0
        %v1456 = vand.u32 %v1296, 4294901760
        %1457 = vmatpush.msra.mxu0 %v1456
        %v1458 = vand.u32 %v1303, 4294901760
        %v1459 = vsub.f32 %v1303, %v1458
        %v1460 = vand.u32 %v1459, 4294901760
        %1461 = vmatmul.f32.gmra.mxu0 %v1460
        %v1462 = vpop.f32.mrf.mxu0
        %v1463 = vadd.f32 %v1424, %v1462
        %v1464 = vand.u32 %v1306, 4294901760
        %v1465 = vsub.f32 %v1306, %v1464
        %v1466 = vand.u32 %v1465, 4294901760
        %1467 = vmatmul.f32.gmra.mxu0 %v1466
        %v1468 = vpop.f32.mrf.mxu0
        %v1469 = vadd.f32 %v1429, %v1468
        %v1470 = vand.u32 %v1309, 4294901760
        %v1471 = vsub.f32 %v1309, %v1470
        %v1472 = vand.u32 %v1471, 4294901760
        %1473 = vmatmul.f32.gmra.mxu0 %v1472
        %v1474 = vpop.f32.mrf.mxu0
        %v1475 = vadd.f32 %v1434, %v1474
        %v1476 = vand.u32 %v1312, 4294901760
        %v1477 = vsub.f32 %v1312, %v1476
        %v1478 = vand.u32 %v1477, 4294901760
        %1479 = vmatmul.f32.gmra.mxu0 %v1478
        %v1480 = vpop.f32.mrf.mxu0
        %v1481 = vadd.f32 %v1439, %v1480
        %1482 = vdwg.mxu0
        %1483 = vmatpush.msra.mxu0 0.0
        %1484 = vmatpush.msra.mxu0 0.0
        %1485 = vmatpush.msra.mxu0 0.0
        %1486 = vmatpush.msra.mxu0 0.0
        %1487 = vmatpush.msra.mxu0 0.0
        %1488 = vmatpush.msra.mxu0 0.0
        %1489 = vmatpush.msra.mxu0 0.0
        %1490 = vmatpush.msra.mxu0 0.0
        %1491 = vmatpush.msra.mxu0 0.0
        %1492 = vmatpush.msra.mxu0 0.0
        %1493 = vmatpush.msra.mxu0 0.0
        %1494 = vmatpush.msra.mxu0 0.0
        %1495 = vmatpush.msra.mxu0 0.0
        %1496 = vmatpush.msra.mxu0 0.0
        %1497 = vmatpush.msra.mxu0 0.0
        %v1498 = vand.u32 %v1296, 4294901760
        %v1499 = vsub.f32 %v1296, %v1498
        %v1500 = vand.u32 %v1499, 4294901760
        %1501 = vmatpush.msra.mxu0 %v1500
        %v1502 = vand.u32 %v1303, 4294901760
        %1503 = vmatmul.f32.gmra.mxu0 %v1502
        %v1504 = vpop.f32.mrf.mxu0
        %v1505 = vadd.f32 %v1463, %v1504
        %v1506 = vand.u32 %v1306, 4294901760
        %1507 = vmatmul.f32.gmra.mxu0 %v1506
        %v1508 = vpop.f32.mrf.mxu0
        %v1509 = vadd.f32 %v1469, %v1508
        %v1510 = vand.u32 %v1309, 4294901760
        %1511 = vmatmul.f32.gmra.mxu0 %v1510
        %v1512 = vpop.f32.mrf.mxu0
        %v1513 = vadd.f32 %v1475, %v1512
        %v1514 = vand.u32 %v1312, 4294901760
        %1515 = vmatmul.f32.gmra.mxu0 %v1514
        %v1516 = vpop.f32.mrf.mxu0
        %v1517 = vadd.f32 %v1481, %v1516
        %1518 = vdwg.mxu0
        %1519 = vmatpush.msra.mxu0 0.0
        %1520 = vmatpush.msra.mxu0 0.0
        %1521 = vmatpush.msra.mxu0 0.0
        %1522 = vmatpush.msra.mxu0 0.0
        %1523 = vmatpush.msra.mxu0 0.0
        %1524 = vmatpush.msra.mxu0 0.0
        %1525 = vmatpush.msra.mxu0 0.0
        %1526 = vmatpush.msra.mxu0 0.0
        %1527 = vmatpush.msra.mxu0 0.0
        %1528 = vmatpush.msra.mxu0 0.0
        %1529 = vmatpush.msra.mxu0 0.0
        %1530 = vmatpush.msra.mxu0 0.0
        %1531 = vmatpush.msra.mxu0 0.0
        %1532 = vmatpush.msra.mxu0 0.0
        %1533 = vmatpush.msra.mxu0 0.0
        %v1534 = vand.u32 %v1296, 4294901760
        %1535 = vmatpush.msra.mxu0 %v1534
        %v1536 = vand.u32 %v1303, 4294901760
        %1537 = vmatmul.f32.gmra.mxu0 %v1536
        %v1538 = vpop.f32.mrf.mxu0
        %v1539 = vadd.f32 %v1505, %v1538
        %v1540 = vand.u32 %v1306, 4294901760
        %1541 = vmatmul.f32.gmra.mxu0 %v1540
        %v1542 = vpop.f32.mrf.mxu0
        %v1543 = vadd.f32 %v1509, %v1542
        %v1544 = vand.u32 %v1309, 4294901760
        %1545 = vmatmul.f32.gmra.mxu0 %v1544
        %v1546 = vpop.f32.mrf.mxu0
        %v1547 = vadd.f32 %v1513, %v1546
        %v1548 = vand.u32 %v1312, 4294901760
        %1549 = vmatmul.f32.gmra.mxu0 %v1548
        %v1550 = vpop.f32.mrf.mxu0
        %v1551 = vadd.f32 %v1517, %v1550
        %1552 = vdwg.mxu0
        %v1553 = vld [vmem:[%s11] sm:$0x1]
        %v1554 = vld [vmem:[%s12] sm:$0x1]
        %1555 = vadd.xlane.f32.xlu0 %v1539
        %v1556 = vpop.xlane.xlu0 %1555
        %1557 = vadd.xlane.f32.xlu0 %v1543
        %v1558 = vpop.xlane.xlu0 %1557
        %1559 = vadd.xlane.f32.xlu0 %v1547
        %v1560 = vpop.xlane.xlu0 %1559
        %1561 = vadd.xlane.f32.xlu0 %v1551
        %v1562 = vpop.xlane.xlu0 %1561
        %v1563 = vmul.f32 %v1556, 0.03125
        %v1564 = vmul.f32 %v1558, 0.03125
        %v1565 = vmul.f32 %v1560, 0.03125
        %v1566 = vmul.f32 %v1562, 0.03125
        %v1567 = vsub.f32 %v1539, %v1563
        %v1568 = vsub.f32 %v1543, %v1564
        %v1569 = vsub.f32 %v1547, %v1565
        %v1570 = vsub.f32 %v1551, %v1566
        %v1571 = vmul.f32 %v1567, %v689
        %v1572 = vmul.f32 %v1568, %v689
        %v1573 = vmul.f32 %v1569, %v689
        %v1574 = vmul.f32 %v1570, %v689
        %v1575 = vmul.f32 %v1571, %v1571
        %v1576 = vmul.f32 %v1572, %v1572
        %v1577 = vmul.f32 %v1573, %v1573
        %v1578 = vmul.f32 %v1574, %v1574
        %1579 = vadd.xlane.f32.xlu0 %v1575
        %v1580 = vpop.xlane.xlu0 %1579
        %1581 = vadd.xlane.f32.xlu0 %v1576
        %v1582 = vpop.xlane.xlu0 %1581
        %1583 = vadd.xlane.f32.xlu0 %v1577
        %v1584 = vpop.xlane.xlu0 %1583
        %1585 = vadd.xlane.f32.xlu0 %v1578
        %v1586 = vpop.xlane.xlu0 %1585
        %v1587 = vmul.f32 %v1580, 0.03125
        %v1588 = vmul.f32 %v1582, 0.03125
        %v1589 = vmul.f32 %v1584, 0.03125
        %v1590 = vmul.f32 %v1586, 0.03125
        %v1591 = vadd.f32 %v1587, 1e-12
        %v1592 = vadd.f32 %v1588, 1e-12
        %v1593 = vadd.f32 %v1589, 1e-12
        %v1594 = vadd.f32 %v1590, 1e-12
        %v1595 = vrsqrt.pop %v1591
        %v1596 = vmul.f32 %v1595, %v1591
        %v1597 = vmul.f32 %v1596, %v1595
        %v1598 = vmul.f32 0.5, %v1597
        %v1599 = vsub.f32 1.5, %v1598
        %v1600 = vmul.f32 %v1595, %v1599
        %vm1601 = vweird.f32 %v1591
        %vm1602 = vweird.f32 %v1595
        %vm1603 = vmor %vm1601, %vm1602
        %v1604 = vsel %vm1603, %v1595, %v1600
        %v1605 = vrsqrt.pop %v1592
        %v1606 = vmul.f32 %v1605, %v1592
        %v1607 = vmul.f32 %v1606, %v1605
        %v1608 = vmul.f32 0.5, %v1607
        %v1609 = vsub.f32 1.5, %v1608
        %v1610 = vmul.f32 %v1605, %v1609
        %vm1611 = vweird.f32 %v1592
        %vm1612 = vweird.f32 %v1605
        %vm1613 = vmor %vm1611, %vm1612
        %v1614 = vsel %vm1613, %v1605, %v1610
        %v1615 = vrsqrt.pop %v1593
        %v1616 = vmul.f32 %v1615, %v1593
        %v1617 = vmul.f32 %v1616, %v1615
        %v1618 = vmul.f32 0.5, %v1617
        %v1619 = vsub.f32 1.5, %v1618
        %v1620 = vmul.f32 %v1615, %v1619
        %vm1621 = vweird.f32 %v1593
        %vm1622 = vweird.f32 %v1615
        %vm1623 = vmor %vm1621, %vm1622
        %v1624 = vsel %vm1623, %v1615, %v1620
        %v1625 = vrsqrt.pop %v1594
        %v1626 = vmul.f32 %v1625, %v1594
        %v1627 = vmul.f32 %v1626, %v1625
        %v1628 = vmul.f32 0.5, %v1627
        %v1629 = vsub.f32 1.5, %v1628
        %v1630 = vmul.f32 %v1625, %v1629
        %vm1631 = vweird.f32 %v1594
        %vm1632 = vweird.f32 %v1625
        %vm1633 = vmor %vm1631, %vm1632
        %v1634 = vsel %vm1633, %v1625, %v1630
        %v1635 = vmul.f32 %v1571, %v1604
        %v1636 = vmul.f32 %v1572, %v1614
        %v1637 = vmul.f32 %v1573, %v1624
        %v1638 = vmul.f32 %v1574, %v1634
        %v1640 = vperm.slane %v1553, 0
        %v1642 = vmul.f32 %v1635, %v1640
        %v1643 = vmul.f32 %v1636, %v1640
        %v1644 = vmul.f32 %v1637, %v1640
        %v1645 = vmul.f32 %v1638, %v1640
        %v1647 = vperm.slane %v1554, 0
        %v1649 = vadd.f32 %v1642, %v1647
        %v1650 = vadd.f32 %v1643, %v1647
        %v1651 = vadd.f32 %v1644, %v1647
        %v1652 = vadd.f32 %v1645, %v1647
        %1653 = vset.pattern.permute.xlu0 0
        %1654 = vperm.xlu0 %1653, %v690
        %v1655 = vpop.permute.xlu0 %1654
        %1656 = vset.pattern.permute.xlu0 0
        %1657 = vperm.xlu0 %1656, %v691
        %v1658 = vpop.permute.xlu0 %1657
        %1659 = vset.pattern.permute.xlu0 0
        %1660 = vperm.xlu0 %1659, %v692
        %v1661 = vpop.permute.xlu0 %1660
        %1662 = vset.pattern.permute.xlu0 0
        %1663 = vperm.xlu0 %1662, %v693
        %v1664 = vpop.permute.xlu0 %1663
        %vm1665 = vcmp.eq.s32.totalorder %v1655, %v686
        %vm1666 = vcmp.eq.s32.totalorder %v1658, %v686
        %vm1667 = vcmp.eq.s32.totalorder %v1661, %v686
        %vm1668 = vcmp.eq.s32.totalorder %v1664, %v686
        %v1669 = vsel %vm1665, 1, 0
        %v1670 = vsel %vm1666, 1, 0
        %v1671 = vsel %vm1667, 1, 0
        %v1672 = vsel %vm1668, 1, 0
        %v1673 = vcvt.s32.f32 %v1669
        %v1674 = vcvt.s32.f32 %v1670
        %v1675 = vcvt.s32.f32 %v1671
        %v1676 = vcvt.s32.f32 %v1672
        %v1677 = vld [vmem:[%s13] sm:$0xff]
        %v1678 = vld [vmem:[%s13 + $0x8] sm:$0xff]
        %v1679 = vld [vmem:[%s13 + $0x10] sm:$0xff]
        %v1680 = vld [vmem:[%s13 + $0x18] sm:$0xff]
        %v1681 = vld [vmem:[%s13 + $0x20] sm:$0xff]
        %v1682 = vld [vmem:[%s13 + $0x28] sm:$0xff]
        %v1683 = vld [vmem:[%s13 + $0x30] sm:$0xff]
        %v1684 = vld [vmem:[%s13 + $0x38] sm:$0xff]
        %v1685 = vld [vmem:[%s13 + $0x40] sm:$0xff]
        %v1686 = vld [vmem:[%s13 + $0x48] sm:$0xff]
        %v1687 = vld [vmem:[%s13 + $0x50] sm:$0xff]
        %v1688 = vld [vmem:[%s13 + $0x58] sm:$0xff]
        %v1689 = vld [vmem:[%s13 + $0x60] sm:$0xff]
        %v1690 = vld [vmem:[%s13 + $0x68] sm:$0xff]
        %v1691 = vld [vmem:[%s13 + $0x70] sm:$0xff]
        %v1692 = vld [vmem:[%s13 + $0x78] sm:$0xff]
        %v1693 = vand.u32 %v1692, 4294901760
        %1694 = vmatpush.msra.mxu0 %v1693
        %v1695 = vand.u32 %v1691, 4294901760
        %1696 = vmatpush.msra.mxu0 %v1695
        %v1697 = vand.u32 %v1690, 4294901760
        %1698 = vmatpush.msra.mxu0 %v1697
        %v1699 = vand.u32 %v1689, 4294901760
        %1700 = vmatpush.msra.mxu0 %v1699
        %v1701 = vand.u32 %v1688, 4294901760
        %1702 = vmatpush.msra.mxu0 %v1701
        %v1703 = vand.u32 %v1687, 4294901760
        %1704 = vmatpush.msra.mxu0 %v1703
        %v1705 = vand.u32 %v1686, 4294901760
        %1706 = vmatpush.msra.mxu0 %v1705
        %v1707 = vand.u32 %v1685, 4294901760
        %1708 = vmatpush.msra.mxu0 %v1707
        %v1709 = vand.u32 %v1684, 4294901760
        %1710 = vmatpush.msra.mxu0 %v1709
        %v1711 = vand.u32 %v1683, 4294901760
        %1712 = vmatpush.msra.mxu0 %v1711
        %v1713 = vand.u32 %v1682, 4294901760
        %1714 = vmatpush.msra.mxu0 %v1713
        %v1715 = vand.u32 %v1681, 4294901760
        %1716 = vmatpush.msra.mxu0 %v1715
        %v1717 = vand.u32 %v1680, 4294901760
        %1718 = vmatpush.msra.mxu0 %v1717
        %v1719 = vand.u32 %v1679, 4294901760
        %1720 = vmatpush.msra.mxu0 %v1719
        %v1721 = vand.u32 %v1678, 4294901760
        %1722 = vmatpush.msra.mxu0 %v1721
        %v1723 = vand.u32 %v1677, 4294901760
        %1724 = vmatpush.msra.mxu0 %v1723
        %v1725 = vand.u32 %v1673, 4294901760
        %v1726 = vsub.f32 %v1673, %v1725
        %v1727 = vand.u32 %v1726, 4294901760
        %v1728 = vsub.f32 %v1726, %v1727
        %v1729 = vand.u32 %v1728, 4294901760
        %1730 = vmatmul.f32.gmra.mxu0 %v1729
        %v1731 = vpop.f32.mrf.mxu0
        %v1732 = vadd.f32 0.0, %v1731
        %v1733 = vand.u32 %v1674, 4294901760
        %v1734 = vsub.f32 %v1674, %v1733
        %v1735 = vand.u32 %v1734, 4294901760
        %v1736 = vsub.f32 %v1734, %v1735
        %v1737 = vand.u32 %v1736, 4294901760
        %1738 = vmatmul.f32.gmra.mxu0 %v1737
        %v1739 = vpop.f32.mrf.mxu0
        %v1740 = vadd.f32 0.0, %v1739
        %v1741 = vand.u32 %v1675, 4294901760
        %v1742 = vsub.f32 %v1675, %v1741
        %v1743 = vand.u32 %v1742, 4294901760
        %v1744 = vsub.f32 %v1742, %v1743
        %v1745 = vand.u32 %v1744, 4294901760
        %1746 = vmatmul.f32.gmra.mxu0 %v1745
        %v1747 = vpop.f32.mrf.mxu0
        %v1748 = vadd.f32 0.0, %v1747
        %v1749 = vand.u32 %v1676, 4294901760
        %v1750 = vsub.f32 %v1676, %v1749
        %v1751 = vand.u32 %v1750, 4294901760
        %v1752 = vsub.f32 %v1750, %v1751
        %v1753 = vand.u32 %v1752, 4294901760
        %1754 = vmatmul.f32.gmra.mxu0 %v1753
        %v1755 = vpop.f32.mrf.mxu0
        %v1756 = vadd.f32 0.0, %v1755
        %1757 = vdwg.mxu0
        %v1758 = vand.u32 %v1692, 4294901760
        %v1759 = vsub.f32 %v1692, %v1758
        %v1760 = vand.u32 %v1759, 4294901760
        %v1761 = vsub.f32 %v1759, %v1760
        %v1762 = vand.u32 %v1761, 4294901760
        %1763 = vmatpush.msra.mxu0 %v1762
        %v1764 = vand.u32 %v1691, 4294901760
        %v1765 = vsub.f32 %v1691, %v1764
        %v1766 = vand.u32 %v1765, 4294901760
        %v1767 = vsub.f32 %v1765, %v1766
        %v1768 = vand.u32 %v1767, 4294901760
        %1769 = vmatpush.msra.mxu0 %v1768
        %v1770 = vand.u32 %v1690, 4294901760
        %v1771 = vsub.f32 %v1690, %v1770
        %v1772 = vand.u32 %v1771, 4294901760
        %v1773 = vsub.f32 %v1771, %v1772
        %v1774 = vand.u32 %v1773, 4294901760
        %1775 = vmatpush.msra.mxu0 %v1774
        %v1776 = vand.u32 %v1689, 4294901760
        %v1777 = vsub.f32 %v1689, %v1776
        %v1778 = vand.u32 %v1777, 4294901760
        %v1779 = vsub.f32 %v1777, %v1778
        %v1780 = vand.u32 %v1779, 4294901760
        %1781 = vmatpush.msra.mxu0 %v1780
        %v1782 = vand.u32 %v1688, 4294901760
        %v1783 = vsub.f32 %v1688, %v1782
        %v1784 = vand.u32 %v1783, 4294901760
        %v1785 = vsub.f32 %v1783, %v1784
        %v1786 = vand.u32 %v1785, 4294901760
        %1787 = vmatpush.msra.mxu0 %v1786
        %v1788 = vand.u32 %v1687, 4294901760
        %v1789 = vsub.f32 %v1687, %v1788
        %v1790 = vand.u32 %v1789, 4294901760
        %v1791 = vsub.f32 %v1789, %v1790
        %v1792 = vand.u32 %v1791, 4294901760
        %1793 = vmatpush.msra.mxu0 %v1792
        %v1794 = vand.u32 %v1686, 4294901760
        %v1795 = vsub.f32 %v1686, %v1794
        %v1796 = vand.u32 %v1795, 4294901760
        %v1797 = vsub.f32 %v1795, %v1796
        %v1798 = vand.u32 %v1797, 4294901760
        %1799 = vmatpush.msra.mxu0 %v1798
        %v1800 = vand.u32 %v1685, 4294901760
        %v1801 = vsub.f32 %v1685, %v1800
        %v1802 = vand.u32 %v1801, 4294901760
        %v1803 = vsub.f32 %v1801, %v1802
        %v1804 = vand.u32 %v1803, 4294901760
        %1805 = vmatpush.msra.mxu0 %v1804
        %v1806 = vand.u32 %v1684, 4294901760
        %v1807 = vsub.f32 %v1684, %v1806
        %v1808 = vand.u32 %v1807, 4294901760
        %v1809 = vsub.f32 %v1807, %v1808
        %v1810 = vand.u32 %v1809, 4294901760
        %1811 = vmatpush.msra.mxu0 %v1810
        %v1812 = vand.u32 %v1683, 4294901760
        %v1813 = vsub.f32 %v1683, %v1812
        %v1814 = vand.u32 %v1813, 4294901760
        %v1815 = vsub.f32 %v1813, %v1814
        %v1816 = vand.u32 %v1815, 4294901760
        %1817 = vmatpush.msra.mxu0 %v1816
        %v1818 = vand.u32 %v1682, 4294901760
        %v1819 = vsub.f32 %v1682, %v1818
        %v1820 = vand.u32 %v1819, 4294901760
        %v1821 = vsub.f32 %v1819, %v1820
        %v1822 = vand.u32 %v1821, 4294901760
        %1823 = vmatpush.msra.mxu0 %v1822
        %v1824 = vand.u32 %v1681, 4294901760
        %v1825 = vsub.f32 %v1681, %v1824
        %v1826 = vand.u32 %v1825, 4294901760
        %v1827 = vsub.f32 %v1825, %v1826
        %v1828 = vand.u32 %v1827, 4294901760
        %1829 = vmatpush.msra.mxu0 %v1828
        %v1830 = vand.u32 %v1680, 4294901760
        %v1831 = vsub.f32 %v1680, %v1830
        %v1832 = vand.u32 %v1831, 4294901760
        %v1833 = vsub.f32 %v1831, %v1832
        %v1834 = vand.u32 %v1833, 4294901760
        %1835 = vmatpush.msra.mxu0 %v1834
        %v1836 = vand.u32 %v1679, 4294901760
        %v1837 = vsub.f32 %v1679, %v1836
        %v1838 = vand.u32 %v1837, 4294901760
        %v1839 = vsub.f32 %v1837, %v1838
        %v1840 = vand.u32 %v1839, 4294901760
        %1841 = vmatpush.msra.mxu0 %v1840
        %v1842 = vand.u32 %v1678, 4294901760
        %v1843 = vsub.f32 %v1678, %v1842
        %v1844 = vand.u32 %v1843, 4294901760
        %v1845 = vsub.f32 %v1843, %v1844
        %v1846 = vand.u32 %v1845, 4294901760
        %1847 = vmatpush.msra.mxu0 %v1846
        %v1848 = vand.u32 %v1677, 4294901760
        %v1849 = vsub.f32 %v1677, %v1848
        %v1850 = vand.u32 %v1849, 4294901760
        %v1851 = vsub.f32 %v1849, %v1850
        %v1852 = vand.u32 %v1851, 4294901760
        %1853 = vmatpush.msra.mxu0 %v1852
        %v1854 = vand.u32 %v1673, 4294901760
        %1855 = vmatmul.f32.gmra.mxu0 %v1854
        %v1856 = vpop.f32.mrf.mxu0
        %v1857 = vadd.f32 %v1732, %v1856
        %v1858 = vand.u32 %v1674, 4294901760
        %1859 = vmatmul.f32.gmra.mxu0 %v1858
        %v1860 = vpop.f32.mrf.mxu0
        %v1861 = vadd.f32 %v1740, %v1860
        %v1862 = vand.u32 %v1675, 4294901760
        %1863 = vmatmul.f32.gmra.mxu0 %v1862
        %v1864 = vpop.f32.mrf.mxu0
        %v1865 = vadd.f32 %v1748, %v1864
        %v1866 = vand.u32 %v1676, 4294901760
        %1867 = vmatmul.f32.gmra.mxu0 %v1866
        %v1868 = vpop.f32.mrf.mxu0
        %v1869 = vadd.f32 %v1756, %v1868
        %1870 = vdwg.mxu0
        %v1871 = vand.u32 %v1692, 4294901760
        %v1872 = vsub.f32 %v1692, %v1871
        %1873 = vmatpush.msra.mxu0 %v1872
        %v1874 = vand.u32 %v1691, 4294901760
        %v1875 = vsub.f32 %v1691, %v1874
        %1876 = vmatpush.msra.mxu0 %v1875
        %v1877 = vand.u32 %v1690, 4294901760
        %v1878 = vsub.f32 %v1690, %v1877
        %1879 = vmatpush.msra.mxu0 %v1878
        %v1880 = vand.u32 %v1689, 4294901760
        %v1881 = vsub.f32 %v1689, %v1880
        %1882 = vmatpush.msra.mxu0 %v1881
        %v1883 = vand.u32 %v1688, 4294901760
        %v1884 = vsub.f32 %v1688, %v1883
        %1885 = vmatpush.msra.mxu0 %v1884
        %v1886 = vand.u32 %v1687, 4294901760
        %v1887 = vsub.f32 %v1687, %v1886
        %1888 = vmatpush.msra.mxu0 %v1887
        %v1889 = vand.u32 %v1686, 4294901760
        %v1890 = vsub.f32 %v1686, %v1889
        %1891 = vmatpush.msra.mxu0 %v1890
        %v1892 = vand.u32 %v1685, 4294901760
        %v1893 = vsub.f32 %v1685, %v1892
        %1894 = vmatpush.msra.mxu0 %v1893
        %v1895 = vand.u32 %v1684, 4294901760
        %v1896 = vsub.f32 %v1684, %v1895
        %1897 = vmatpush.msra.mxu0 %v1896
        %v1898 = vand.u32 %v1683, 4294901760
        %v1899 = vsub.f32 %v1683, %v1898
        %1900 = vmatpush.msra.mxu0 %v1899
        %v1901 = vand.u32 %v1682, 4294901760
        %v1902 = vsub.f32 %v1682, %v1901
        %1903 = vmatpush.msra.mxu0 %v1902
        %v1904 = vand.u32 %v1681, 4294901760
        %v1905 = vsub.f32 %v1681, %v1904
        %1906 = vmatpush.msra.mxu0 %v1905
        %v1907 = vand.u32 %v1680, 4294901760
        %v1908 = vsub.f32 %v1680, %v1907
        %1909 = vmatpush.msra.mxu0 %v1908
        %v1910 = vand.u32 %v1679, 4294901760
        %v1911 = vsub.f32 %v1679, %v1910
        %1912 = vmatpush.msra.mxu0 %v1911
        %v1913 = vand.u32 %v1678, 4294901760
        %v1914 = vsub.f32 %v1678, %v1913
        %1915 = vmatpush.msra.mxu0 %v1914
        %v1916 = vand.u32 %v1677, 4294901760
        %v1917 = vsub.f32 %v1677, %v1916
        %1918 = vmatpush.msra.mxu0 %v1917
        %v1919 = vand.u32 %v1673, 4294901760
        %v1920 = vsub.f32 %v1673, %v1919
        %1921 = vmatmul.f32.gmra.mxu0 %v1920
        %v1922 = vpop.f32.mrf.mxu0
        %v1923 = vadd.f32 %v1857, %v1922
        %v1924 = vand.u32 %v1674, 4294901760
        %v1925 = vsub.f32 %v1674, %v1924
        %1926 = vmatmul.f32.gmra.mxu0 %v1925
        %v1927 = vpop.f32.mrf.mxu0
        %v1928 = vadd.f32 %v1861, %v1927
        %v1929 = vand.u32 %v1675, 4294901760
        %v1930 = vsub.f32 %v1675, %v1929
        %1931 = vmatmul.f32.gmra.mxu0 %v1930
        %v1932 = vpop.f32.mrf.mxu0
        %v1933 = vadd.f32 %v1865, %v1932
        %v1934 = vand.u32 %v1676, 4294901760
        %v1935 = vsub.f32 %v1676, %v1934
        %1936 = vmatmul.f32.gmra.mxu0 %v1935
        %v1937 = vpop.f32.mrf.mxu0
        %v1938 = vadd.f32 %v1869, %v1937
        %1939 = vdwg.mxu0
        %v1940 = vand.u32 %v1692, 4294901760
        %1941 = vmatpush.msra.mxu0 %v1940
        %v1942 = vand.u32 %v1691, 4294901760
        %1943 = vmatpush.msra.mxu0 %v1942
        %v1944 = vand.u32 %v1690, 4294901760
        %1945 = vmatpush.msra.mxu0 %v1944
        %v1946 = vand.u32 %v1689, 4294901760
        %1947 = vmatpush.msra.mxu0 %v1946
        %v1948 = vand.u32 %v1688, 4294901760
        %1949 = vmatpush.msra.mxu0 %v1948
        %v1950 = vand.u32 %v1687, 4294901760
        %1951 = vmatpush.msra.mxu0 %v1950
        %v1952 = vand.u32 %v1686, 4294901760
        %1953 = vmatpush.msra.mxu0 %v1952
        %v1954 = vand.u32 %v1685, 4294901760
        %1955 = vmatpush.msra.mxu0 %v1954
        %v1956 = vand.u32 %v1684, 4294901760
        %1957 = vmatpush.msra.mxu0 %v1956
        %v1958 = vand.u32 %v1683, 4294901760
        %1959 = vmatpush.msra.mxu0 %v1958
        %v1960 = vand.u32 %v1682, 4294901760
        %1961 = vmatpush.msra.mxu0 %v1960
        %v1962 = vand.u32 %v1681, 4294901760
        %1963 = vmatpush.msra.mxu0 %v1962
        %v1964 = vand.u32 %v1680, 4294901760
        %1965 = vmatpush.msra.mxu0 %v1964
        %v1966 = vand.u32 %v1679, 4294901760
        %1967 = vmatpush.msra.mxu0 %v1966
        %v1968 = vand.u32 %v1678, 4294901760
        %1969 = vmatpush.msra.mxu0 %v1968
        %v1970 = vand.u32 %v1677, 4294901760
        %1971 = vmatpush.msra.mxu0 %v1970
        %v1972 = vand.u32 %v1673, 4294901760
        %v1973 = vsub.f32 %v1673, %v1972
        %v1974 = vand.u32 %v1973, 4294901760
        %1975 = vmatmul.f32.gmra.mxu0 %v1974
        %v1976 = vpop.f32.mrf.mxu0
        %v1977 = vadd.f32 %v1923, %v1976
        %v1978 = vand.u32 %v1674, 4294901760
        %v1979 = vsub.f32 %v1674, %v1978
        %v1980 = vand.u32 %v1979, 4294901760
        %1981 = vmatmul.f32.gmra.mxu0 %v1980
        %v1982 = vpop.f32.mrf.mxu0
        %v1983 = vadd.f32 %v1928, %v1982
        %v1984 = vand.u32 %v1675, 4294901760
        %v1985 = vsub.f32 %v1675, %v1984
        %v1986 = vand.u32 %v1985, 4294901760
        %1987 = vmatmul.f32.gmra.mxu0 %v1986
        %v1988 = vpop.f32.mrf.mxu0
        %v1989 = vadd.f32 %v1933, %v1988
        %v1990 = vand.u32 %v1676, 4294901760
        %v1991 = vsub.f32 %v1676, %v1990
        %v1992 = vand.u32 %v1991, 4294901760
        %1993 = vmatmul.f32.gmra.mxu0 %v1992
        %v1994 = vpop.f32.mrf.mxu0
        %v1995 = vadd.f32 %v1938, %v1994
        %1996 = vdwg.mxu0
        %v1997 = vand.u32 %v1692, 4294901760
        %v1998 = vsub.f32 %v1692, %v1997
        %v1999 = vand.u32 %v1998, 4294901760
        %2000 = vmatpush.msra.mxu0 %v1999
        %v2001 = vand.u32 %v1691, 4294901760
        %v2002 = vsub.f32 %v1691, %v2001
        %v2003 = vand.u32 %v2002, 4294901760
        %2004 = vmatpush.msra.mxu0 %v2003
        %v2005 = vand.u32 %v1690, 4294901760
        %v2006 = vsub.f32 %v1690, %v2005
        %v2007 = vand.u32 %v2006, 4294901760
        %2008 = vmatpush.msra.mxu0 %v2007
        %v2009 = vand.u32 %v1689, 4294901760
        %v2010 = vsub.f32 %v1689, %v2009
        %v2011 = vand.u32 %v2010, 4294901760
        %2012 = vmatpush.msra.mxu0 %v2011
        %v2013 = vand.u32 %v1688, 4294901760
        %v2014 = vsub.f32 %v1688, %v2013
        %v2015 = vand.u32 %v2014, 4294901760
        %2016 = vmatpush.msra.mxu0 %v2015
        %v2017 = vand.u32 %v1687, 4294901760
        %v2018 = vsub.f32 %v1687, %v2017
        %v2019 = vand.u32 %v2018, 4294901760
        %2020 = vmatpush.msra.mxu0 %v2019
        %v2021 = vand.u32 %v1686, 4294901760
        %v2022 = vsub.f32 %v1686, %v2021
        %v2023 = vand.u32 %v2022, 4294901760
        %2024 = vmatpush.msra.mxu0 %v2023
        %v2025 = vand.u32 %v1685, 4294901760
        %v2026 = vsub.f32 %v1685, %v2025
        %v2027 = vand.u32 %v2026, 4294901760
        %2028 = vmatpush.msra.mxu0 %v2027
        %v2029 = vand.u32 %v1684, 4294901760
        %v2030 = vsub.f32 %v1684, %v2029
        %v2031 = vand.u32 %v2030, 4294901760
        %2032 = vmatpush.msra.mxu0 %v2031
        %v2033 = vand.u32 %v1683, 4294901760
        %v2034 = vsub.f32 %v1683, %v2033
        %v2035 = vand.u32 %v2034, 4294901760
        %2036 = vmatpush.msra.mxu0 %v2035
        %v2037 = vand.u32 %v1682, 4294901760
        %v2038 = vsub.f32 %v1682, %v2037
        %v2039 = vand.u32 %v2038, 4294901760
        %2040 = vmatpush.msra.mxu0 %v2039
        %v2041 = vand.u32 %v1681, 4294901760
        %v2042 = vsub.f32 %v1681, %v2041
        %v2043 = vand.u32 %v2042, 4294901760
        %2044 = vmatpush.msra.mxu0 %v2043
        %v2045 = vand.u32 %v1680, 4294901760
        %v2046 = vsub.f32 %v1680, %v2045
        %v2047 = vand.u32 %v2046, 4294901760
        %2048 = vmatpush.msra.mxu0 %v2047
        %v2049 = vand.u32 %v1679, 4294901760
        %v2050 = vsub.f32 %v1679, %v2049
        %v2051 = vand.u32 %v2050, 4294901760
        %2052 = vmatpush.msra.mxu0 %v2051
        %v2053 = vand.u32 %v1678, 4294901760
        %v2054 = vsub.f32 %v1678, %v2053
        %v2055 = vand.u32 %v2054, 4294901760
        %2056 = vmatpush.msra.mxu0 %v2055
        %v2057 = vand.u32 %v1677, 4294901760
        %v2058 = vsub.f32 %v1677, %v2057
        %v2059 = vand.u32 %v2058, 4294901760
        %2060 = vmatpush.msra.mxu0 %v2059
        %v2061 = vand.u32 %v1673, 4294901760
        %2062 = vmatmul.f32.gmra.mxu0 %v2061
        %v2063 = vpop.f32.mrf.mxu0
        %v2064 = vadd.f32 %v1977, %v2063
        %v2065 = vand.u32 %v1674, 4294901760
        %2066 = vmatmul.f32.gmra.mxu0 %v2065
        %v2067 = vpop.f32.mrf.mxu0
        %v2068 = vadd.f32 %v1983, %v2067
        %v2069 = vand.u32 %v1675, 4294901760
        %2070 = vmatmul.f32.gmra.mxu0 %v2069
        %v2071 = vpop.f32.mrf.mxu0
        %v2072 = vadd.f32 %v1989, %v2071
        %v2073 = vand.u32 %v1676, 4294901760
        %2074 = vmatmul.f32.gmra.mxu0 %v2073
        %v2075 = vpop.f32.mrf.mxu0
        %v2076 = vadd.f32 %v1995, %v2075
        %2077 = vdwg.mxu0
        %v2078 = vand.u32 %v1692, 4294901760
        %2079 = vmatpush.msra.mxu0 %v2078
        %v2080 = vand.u32 %v1691, 4294901760
        %2081 = vmatpush.msra.mxu0 %v2080
        %v2082 = vand.u32 %v1690, 4294901760
        %2083 = vmatpush.msra.mxu0 %v2082
        %v2084 = vand.u32 %v1689, 4294901760
        %2085 = vmatpush.msra.mxu0 %v2084
        %v2086 = vand.u32 %v1688, 4294901760
        %2087 = vmatpush.msra.mxu0 %v2086
        %v2088 = vand.u32 %v1687, 4294901760
        %2089 = vmatpush.msra.mxu0 %v2088
        %v2090 = vand.u32 %v1686, 4294901760
        %2091 = vmatpush.msra.mxu0 %v2090
        %v2092 = vand.u32 %v1685, 4294901760
        %2093 = vmatpush.msra.mxu0 %v2092
        %v2094 = vand.u32 %v1684, 4294901760
        %2095 = vmatpush.msra.mxu0 %v2094
        %v2096 = vand.u32 %v1683, 4294901760
        %2097 = vmatpush.msra.mxu0 %v2096
        %v2098 = vand.u32 %v1682, 4294901760
        %2099 = vmatpush.msra.mxu0 %v2098
        %v2100 = vand.u32 %v1681, 4294901760
        %2101 = vmatpush.msra.mxu0 %v2100
        %v2102 = vand.u32 %v1680, 4294901760
        %2103 = vmatpush.msra.mxu0 %v2102
        %v2104 = vand.u32 %v1679, 4294901760
        %2105 = vmatpush.msra.mxu0 %v2104
        %v2106 = vand.u32 %v1678, 4294901760
        %2107 = vmatpush.msra.mxu0 %v2106
        %v2108 = vand.u32 %v1677, 4294901760
        %2109 = vmatpush.msra.mxu0 %v2108
        %v2110 = vand.u32 %v1673, 4294901760
        %2111 = vmatmul.f32.gmra.mxu0 %v2110
        %v2112 = vpop.f32.mrf.mxu0
        %v2113 = vadd.f32 %v2064, %v2112
        %v2114 = vand.u32 %v1674, 4294901760
        %2115 = vmatmul.f32.gmra.mxu0 %v2114
        %v2116 = vpop.f32.mrf.mxu0
        %v2117 = vadd.f32 %v2068, %v2116
        %v2118 = vand.u32 %v1675, 4294901760
        %2119 = vmatmul.f32.gmra.mxu0 %v2118
        %v2120 = vpop.f32.mrf.mxu0
        %v2121 = vadd.f32 %v2072, %v2120
        %v2122 = vand.u32 %v1676, 4294901760
        %2123 = vmatmul.f32.gmra.mxu0 %v2122
        %v2124 = vpop.f32.mrf.mxu0
        %v2125 = vadd.f32 %v2076, %v2124
        %2126 = vdwg.mxu0
        %v2127 = vld [vmem:[%s14] sm:$0x1]
        %v2128 = vld [vmem:[%s15] sm:$0x1]
        %2129 = vadd.xlane.f32.xlu0 %v2113
        %v2130 = vpop.xlane.xlu0 %2129
        %2131 = vadd.xlane.f32.xlu0 %v2117
        %v2132 = vpop.xlane.xlu0 %2131
        %2133 = vadd.xlane.f32.xlu0 %v2121
        %v2134 = vpop.xlane.xlu0 %2133
        %2135 = vadd.xlane.f32.xlu0 %v2125
        %v2136 = vpop.xlane.xlu0 %2135
        %v2137 = vmul.f32 %v2130, 0.03125
        %v2138 = vmul.f32 %v2132, 0.03125
        %v2139 = vmul.f32 %v2134, 0.03125
        %v2140 = vmul.f32 %v2136, 0.03125
        %v2141 = vsub.f32 %v2113, %v2137
        %v2142 = vsub.f32 %v2117, %v2138
        %v2143 = vsub.f32 %v2121, %v2139
        %v2144 = vsub.f32 %v2125, %v2140
        %v2145 = vmul.f32 %v2141, %v689
        %v2146 = vmul.f32 %v2142, %v689
        %v2147 = vmul.f32 %v2143, %v689
        %v2148 = vmul.f32 %v2144, %v689
        %v2149 = vmul.f32 %v2145, %v2145
        %v2150 = vmul.f32 %v2146, %v2146
        %v2151 = vmul.f32 %v2147, %v2147
        %v2152 = vmul.f32 %v2148, %v2148
        %2153 = vadd.xlane.f32.xlu0 %v2149
        %v2154 = vpop.xlane.xlu0 %2153
        %2155 = vadd.xlane.f32.xlu0 %v2150
        %v2156 = vpop.xlane.xlu0 %2155
        %2157 = vadd.xlane.f32.xlu0 %v2151
        %v2158 = vpop.xlane.xlu0 %2157
        %2159 = vadd.xlane.f32.xlu0 %v2152
        %v2160 = vpop.xlane.xlu0 %2159
        %v2161 = vmul.f32 %v2154, 0.03125
        %v2162 = vmul.f32 %v2156, 0.03125
        %v2163 = vmul.f32 %v2158, 0.03125
        %v2164 = vmul.f32 %v2160, 0.03125
        %v2165 = vadd.f32 %v2161, 1e-12
        %v2166 = vadd.f32 %v2162, 1e-12
        %v2167 = vadd.f32 %v2163, 1e-12
        %v2168 = vadd.f32 %v2164, 1e-12
        %v2169 = vrsqrt.pop %v2165
        %v2170 = vmul.f32 %v2169, %v2165
        %v2171 = vmul.f32 %v2170, %v2169
        %v2172 = vmul.f32 0.5, %v2171
        %v2173 = vsub.f32 1.5, %v2172
        %v2174 = vmul.f32 %v2169, %v2173
        %vm2175 = vweird.f32 %v2165
        %vm2176 = vweird.f32 %v2169
        %vm2177 = vmor %vm2175, %vm2176
        %v2178 = vsel %vm2177, %v2169, %v2174
        %v2179 = vrsqrt.pop %v2166
        %v2180 = vmul.f32 %v2179, %v2166
        %v2181 = vmul.f32 %v2180, %v2179
        %v2182 = vmul.f32 0.5, %v2181
        %v2183 = vsub.f32 1.5, %v2182
        %v2184 = vmul.f32 %v2179, %v2183
        %vm2185 = vweird.f32 %v2166
        %vm2186 = vweird.f32 %v2179
        %vm2187 = vmor %vm2185, %vm2186
        %v2188 = vsel %vm2187, %v2179, %v2184
        %v2189 = vrsqrt.pop %v2167
        %v2190 = vmul.f32 %v2189, %v2167
        %v2191 = vmul.f32 %v2190, %v2189
        %v2192 = vmul.f32 0.5, %v2191
        %v2193 = vsub.f32 1.5, %v2192
        %v2194 = vmul.f32 %v2189, %v2193
        %vm2195 = vweird.f32 %v2167
        %vm2196 = vweird.f32 %v2189
        %vm2197 = vmor %vm2195, %vm2196
        %v2198 = vsel %vm2197, %v2189, %v2194
        %v2199 = vrsqrt.pop %v2168
        %v2200 = vmul.f32 %v2199, %v2168
        %v2201 = vmul.f32 %v2200, %v2199
        %v2202 = vmul.f32 0.5, %v2201
        %v2203 = vsub.f32 1.5, %v2202
        %v2204 = vmul.f32 %v2199, %v2203
        %vm2205 = vweird.f32 %v2168
        %vm2206 = vweird.f32 %v2199
        %vm2207 = vmor %vm2205, %vm2206
        %v2208 = vsel %vm2207, %v2199, %v2204
        %v2209 = vmul.f32 %v2145, %v2178
        %v2210 = vmul.f32 %v2146, %v2188
        %v2211 = vmul.f32 %v2147, %v2198
        %v2212 = vmul.f32 %v2148, %v2208
        %v2214 = vperm.slane %v2127, 0
        %v2216 = vmul.f32 %v2209, %v2214
        %v2217 = vmul.f32 %v2210, %v2214
        %v2218 = vmul.f32 %v2211, %v2214
        %v2219 = vmul.f32 %v2212, %v2214
        %v2221 = vperm.slane %v2128, 0
        %v2223 = vadd.f32 %v2216, %v2221
        %v2224 = vadd.f32 %v2217, %v2221
        %v2225 = vadd.f32 %v2218, %v2221
        %v2226 = vadd.f32 %v2219, %v2221
        %v2227 = vld [vmem:[%s601] sm:$0xf]
        %v2228 = vld [vmem:[%s601 + $0x4] sm:$0xf]
        %v2229 = vld [vmem:[%s601 + $0x8] sm:$0xf]
        %v2230 = vld [vmem:[%s601 + $0xc] sm:$0xf]
        %v2231 = vunpack.c.l.bf16 %v2227
        %v2232 = vunpack.c.l.bf16 %v2228
        %v2233 = vunpack.c.l.bf16 %v2229
        %v2234 = vunpack.c.l.bf16 %v2230
        %v2235 = vadd.f32 %v1288, %v2231
        %v2236 = vadd.f32 %v1289, %v2232
        %v2237 = vadd.f32 %v1290, %v2233
        %v2238 = vadd.f32 %v1291, %v2234
        %v2239 = vadd.f32 %v2235, %v1649
        %v2240 = vadd.f32 %v2236, %v1650
        %v2241 = vadd.f32 %v2237, %v1651
        %v2242 = vadd.f32 %v2238, %v1652
        %v2243 = vadd.f32 %v2239, %v2223
        %v2244 = vadd.f32 %v2240, %v2224
        %v2245 = vadd.f32 %v2241, %v2225
        %v2246 = vadd.f32 %v2242, %v2226
        %v2247 = vld [vmem:[%s16] sm:$0x1]
        %v2248 = vld [vmem:[%s17] sm:$0x1]
        %2249 = vadd.xlane.f32.xlu0 %v2243
        %v2250 = vpop.xlane.xlu0 %2249
        %2251 = vadd.xlane.f32.xlu0 %v2244
        %v2252 = vpop.xlane.xlu0 %2251
        %2253 = vadd.xlane.f32.xlu0 %v2245
        %v2254 = vpop.xlane.xlu0 %2253
        %2255 = vadd.xlane.f32.xlu0 %v2246
        %v2256 = vpop.xlane.xlu0 %2255
        %v2257 = vmul.f32 %v2250, 0.03125
        %v2258 = vmul.f32 %v2252, 0.03125
        %v2259 = vmul.f32 %v2254, 0.03125
        %v2260 = vmul.f32 %v2256, 0.03125
        %v2261 = vsub.f32 %v2243, %v2257
        %v2262 = vsub.f32 %v2244, %v2258
        %v2263 = vsub.f32 %v2245, %v2259
        %v2264 = vsub.f32 %v2246, %v2260
        %v2265 = vmul.f32 %v2261, %v689
        %v2266 = vmul.f32 %v2262, %v689
        %v2267 = vmul.f32 %v2263, %v689
        %v2268 = vmul.f32 %v2264, %v689
        %v2269 = vmul.f32 %v2265, %v2265
        %v2270 = vmul.f32 %v2266, %v2266
        %v2271 = vmul.f32 %v2267, %v2267
        %v2272 = vmul.f32 %v2268, %v2268
        %2273 = vadd.xlane.f32.xlu0 %v2269
        %v2274 = vpop.xlane.xlu0 %2273
        %2275 = vadd.xlane.f32.xlu0 %v2270
        %v2276 = vpop.xlane.xlu0 %2275
        %2277 = vadd.xlane.f32.xlu0 %v2271
        %v2278 = vpop.xlane.xlu0 %2277
        %2279 = vadd.xlane.f32.xlu0 %v2272
        %v2280 = vpop.xlane.xlu0 %2279
        %v2281 = vmul.f32 %v2274, 0.03125
        %v2282 = vmul.f32 %v2276, 0.03125
        %v2283 = vmul.f32 %v2278, 0.03125
        %v2284 = vmul.f32 %v2280, 0.03125
        %v2285 = vadd.f32 %v2281, 1e-12
        %v2286 = vadd.f32 %v2282, 1e-12
        %v2287 = vadd.f32 %v2283, 1e-12
        %v2288 = vadd.f32 %v2284, 1e-12
        %v2289 = vrsqrt.pop %v2285
        %v2290 = vmul.f32 %v2289, %v2285
        %v2291 = vmul.f32 %v2290, %v2289
        %v2292 = vmul.f32 0.5, %v2291
        %v2293 = vsub.f32 1.5, %v2292
        %v2294 = vmul.f32 %v2289, %v2293
        %vm2295 = vweird.f32 %v2285
        %vm2296 = vweird.f32 %v2289
        %vm2297 = vmor %vm2295, %vm2296
        %v2298 = vsel %vm2297, %v2289, %v2294
        %v2299 = vrsqrt.pop %v2286
        %v2300 = vmul.f32 %v2299, %v2286
        %v2301 = vmul.f32 %v2300, %v2299
        %v2302 = vmul.f32 0.5, %v2301
        %v2303 = vsub.f32 1.5, %v2302
        %v2304 = vmul.f32 %v2299, %v2303
        %vm2305 = vweird.f32 %v2286
        %vm2306 = vweird.f32 %v2299
        %vm2307 = vmor %vm2305, %vm2306
        %v2308 = vsel %vm2307, %v2299, %v2304
        %v2309 = vrsqrt.pop %v2287
        %v2310 = vmul.f32 %v2309, %v2287
        %v2311 = vmul.f32 %v2310, %v2309
        %v2312 = vmul.f32 0.5, %v2311
        %v2313 = vsub.f32 1.5, %v2312
        %v2314 = vmul.f32 %v2309, %v2313
        %vm2315 = vweird.f32 %v2287
        %vm2316 = vweird.f32 %v2309
        %vm2317 = vmor %vm2315, %vm2316
        %v2318 = vsel %vm2317, %v2309, %v2314
        %v2319 = vrsqrt.pop %v2288
        %v2320 = vmul.f32 %v2319, %v2288
        %v2321 = vmul.f32 %v2320, %v2319
        %v2322 = vmul.f32 0.5, %v2321
        %v2323 = vsub.f32 1.5, %v2322
        %v2324 = vmul.f32 %v2319, %v2323
        %vm2325 = vweird.f32 %v2288
        %vm2326 = vweird.f32 %v2319
        %vm2327 = vmor %vm2325, %vm2326
        %v2328 = vsel %vm2327, %v2319, %v2324
        %v2329 = vmul.f32 %v2265, %v2298
        %v2330 = vmul.f32 %v2266, %v2308
        %v2331 = vmul.f32 %v2267, %v2318
        %v2332 = vmul.f32 %v2268, %v2328
        %v2334 = vperm.slane %v2247, 0
        %v2336 = vmul.f32 %v2329, %v2334
        %v2337 = vmul.f32 %v2330, %v2334
        %v2338 = vmul.f32 %v2331, %v2334
        %v2339 = vmul.f32 %v2332, %v2334
        %v2341 = vperm.slane %v2248, 0
        %v2343 = vadd.f32 %v2336, %v2341
        %v2344 = vadd.f32 %v2337, %v2341
        %v2345 = vadd.f32 %v2338, %v2341
        %v2346 = vadd.f32 %v2339, %v2341
        %2347 = vst [vmem:[%s669] sm:$0xff] %v2343
        %2348 = vst [vmem:[%s669 + $0x8] sm:$0xff] %v2344
        %2349 = vst [vmem:[%s669 + $0x10] sm:$0xff] %v2345
        %2350 = vst [vmem:[%s669 + $0x18] sm:$0xff] %v2346
        %s2351 = sand.u32 %s444, 1
        %s2352 = scalar_lea.sflag [#allocation4], %s2351
        %s2353 = sand.u32 %s444, 1
        %s2354 = smul.addr %s2353, 32
        %s2355 = scalar_lea.vmem [#allocation7], %s2354
        // Predicated region
        $region101: #{tpu_custom_call.1} parent=91 // pred_check
          %p2356 = pneg %p454
        $region102: #{tpu_custom_call.1} parent=91 // pred_check_branch
          %2358 = sbr.rel (%p2356) target = $region104
        $region103: #{tpu_custom_call.1} parent=91 // pred_region
          %s2359 = smul.u32 4, %s38
          %2361 = vsyncadd %s2352, 0
          %s2362 = smul.addr %s2359, 8
          %s2363 = scalar_lea.hbm %s18, %s2362
          %s2364 = sshll.u32 %s2355, 4
          %s2365 = int_to_ptr.vmem [resolvable:$true] %s2364
          %s2366 = sshll.u32 %s2363, 4
          %s2367 = int_to_ptr.hbm [resolvable:$true] %s2366
          %2372 = dma.vmem_to_hbm [thread:$0]  %s2365, 512, %s2367, %s2352, 128, 128, 8
        $region104: #{tpu_custom_call.1} parent=91 // pred_fallthru
          _
      $region92: #{tpu_custom_call.1} parent=5 // pred_fallthru
        _
      %p2373 = scmp.le.s32.totalorder 2, %s33
      // Predicated region
      $region105: #{tpu_custom_call.1} parent=5 // pred_check
        %p2374 = pneg %p2373
      $region106: #{tpu_custom_call.1} parent=5 // pred_check_branch
        %2376 = sbr.rel (%p2374) target = $region108
      $region107: #{tpu_custom_call.1} parent=5 // pred_region
        %s2377 = ssub.s32 %s33, 2
        // Predicated region
        $region109: #{tpu_custom_call.1} parent=107 // pred_check
          %p2378 = pneg %p460
        $region110: #{tpu_custom_call.1} parent=107 // pred_check_branch
          %2380 = sbr.rel (%p2378) target = $region112
        $region111: #{tpu_custom_call.1} parent=107 // pred_region
          %s2381 = sand.u32 %s445, 1
          %s2382 = scalar_lea.sflag [#allocation4], %s2381
          %s2383 = sand.u32 %s445, 1
          %s2384 = smul.addr %s2383, 32
          %s2385 = scalar_lea.vmem [#allocation7], %s2384
          %2387 = dma.done %s2382, 512
        $region112: #{tpu_custom_call.1} parent=107 // pred_fallthru
          _
      $region108: #{tpu_custom_call.1} parent=5 // pred_fallthru
        _
    $region6: #{tpu_custom_call.1} parent=1 // loop_footer
      %s37 = sadd.s32 1, %s33
    $region7: #{tpu_custom_call.1} parent=1 // loop_footer_branch
      %32 = sbr.rel target = $region3
    $region8: #{tpu_custom_call.1} parent=1 // loop_exit
      _
    %2388 = vsyncpa [#allocation3], 1
    %s2389 = scalar_lea.sflag [#allocation3], 1
    %2390 = vsyncpa %s2389, 1
    %2391 = vsyncpa [#allocation6], 1
    %s2392 = scalar_lea.sflag [#allocation6], 1
    %2393 = vsyncpa %s2392, 1
    %2394 = vsyncpa [#allocation4], 1
    %s2395 = scalar_lea.sflag [#allocation4], 1
    %2396 = vsyncpa %s2395, 1

</llo_original>
